<compile_context>
chip_gen: v7x
topology: tpu7x:2x2x1
jax: 0.10.0
libtpu: 0.0.40
codegen_flags: <defaults>
</compile_context>

<pallas_src>
import functools

import jax
import jax.numpy as jnp
from jax.experimental import pallas as pl
from jax.experimental.pallas import tpu as pltpu


def _round_up(x, m):
    return (x + m - 1) // m * m


def _slab_layout(*, seq_len, hidden_size, input_size, stat_size, vel_size):
    """Row/col layout of the single packed f32 weight slab (sublane-aligned)."""
    S, H, C = seq_len, hidden_size, input_size
    G = 4 * H
    sections = [
        ("wx",  C, G),                 # folded lstm_fn @ W_ih^T         [C, 4H]
        ("whh", H, G),                 # W_hh^T                          [H, 4H]
        ("bx",  1, G),                 # lb @ W_ih^T + b_ih + b_hh       [1, 4H]
        ("ow2", S, H),                 # folded out_fn @ out_fn2^T       [S, H]
        ("aw",  vel_size, stat_size),  # attentLinVel W^T                [4, 4]
        ("ab",  1, stat_size),         # attentLinVel bias               [1, 4]
        ("cw",  4, C),                 # Conv2d weight flat (as_h, v_h, as_h1, v_h1)
        ("cb",  1, C),                 # Conv2d bias
        ("ob2", 1, 1),                 # folded output bias
    ]
    layout = {}
    row = 0
    width = 0
    for name, nrows, ncols in sections:
        layout[name] = (row, nrows, ncols)
        row = _round_up(row + nrows, 8)      # keep every section sublane-aligned
        width = max(width, ncols)
    total_rows = _round_up(row, 8)
    total_cols = _round_up(width, 128)       # lane-dense slab
    return layout, total_rows, total_cols


def pack_params(params, *, seq_len, hidden_size, input_size, stat_size, vel_size):
    """Host-side, ONCE per weight set: fold linear layers + pack one f32 slab.

    This runs off the per-call path; the resulting device-resident slab is
    reused by every forward call.
    """
    S, H = seq_len, hidden_size
    p = {k: jnp.asarray(v, jnp.float32) for k, v in params.items()}

    # ---- exact algebraic folds (inference-only) ---------------------------
    wx = p["lw_t"] @ p["wih_t"]                           # [C, 4H]
    bx = p["lb"] @ p["wih_t"] + p["bih"] + p["bhh"]       # [1, 4H]
    ow2 = (p["ow_t"] @ p["o2w"].T).reshape(S, H)          # [S*H, 1] -> [S, H]
    ob2 = p["ob"] @ p["o2w"].T + p["o2b"]                 # [1, 1]

    layout, rows, cols = _slab_layout(
        seq_len=S, hidden_size=H, input_size=input_size,
        stat_size=stat_size, vel_size=vel_size)
    slab = jnp.zeros((rows, cols), jnp.float32)
    pieces = {"wx": wx, "whh": p["whh_t"], "bx": bx, "ow2": ow2,
              "aw": p["aw_t"], "ab": p["ab"], "cw": p["cw_t"], "cb": p["cb"],
              "ob2": ob2}
    for name, arr in pieces.items():
        r, nr, nc = layout[name]
        slab = slab.at[r:r + nr, 0:nc].set(arr)
    return slab, layout


def discriminator_kernel(stat_ref, vel_ref, w_ref, out_ref, *,
                         layout, seq_len, hidden_size, input_size,
                         stat_size, vel_size):
    f32 = jnp.float32
    S, H, C = seq_len, hidden_size, input_size

    def sec(name):                      # static slice of the packed weight slab
        r, nr, nc = layout[name]
        return w_ref[r:r + nr, 0:nc]

    stat = stat_ref[0].astype(f32)                       # [S, stat_size]
    vel = vel_ref[0].astype(f32)                         # [S, vel_size]

    # ---- attention = softmax(Linear(velocity), dim=-1) --------------------
    aw = sec("aw")                                       # [4, 4]  (in, out)
    att = sec("ab")                                      # [1, 4] broadcast
    for k in range(vel_size):            # tiny K=4 contraction on the VPU
        att = att + vel[:, k:k + 1] * aw[k:k + 1, :]
    att = att - jnp.max(att, axis=-1, keepdims=True)
    att = jnp.exp(att)
    att = att * pl.reciprocal(jnp.sum(att, axis=-1, keepdims=True), approx=True)
    att_stat = stat * att                                # [S, 4]

    # ---- Conv2d(1, C, 2) on stack(att_stat, vel) -> ReLU -> sum over H ----
    cw = sec("cw")                                       # [4, C]
    cb_b = jnp.broadcast_to(sec("cb"), (S, C))           # hoisted broadcasts
    cw_b = [jnp.broadcast_to(cw[r:r + 1, :], (S, C)) for r in range(4)]
    feat = jnp.zeros((S, C), dtype=f32)
    for h in range(stat_size - 1):                       # output height = 3
        term = (att_stat[:, h:h + 1] * cw_b[0]
                + vel[:, h:h + 1] * cw_b[1]
                + att_stat[:, h + 1:h + 2] * cw_b[2]
                + vel[:, h + 1:h + 2] * cw_b[3]
                + cb_b)
        feat = feat + jnp.maximum(term, 0.0)             # ReLU then spatial sum

    # ---- folded (lstm_fn o W_ih) input projection --------------------------
    xproj = jnp.dot(feat, sec("wx"), preferred_element_type=f32) + sec("bx")  # [S,4H]

    # ---- single-layer LSTM (batch=1, batch_first, h0=c0=0) -----------------
    whh = sec("whh")                                     # [H, 4H]
    ow2 = sec("ow2")                                     # [S, H]
    h_t = jnp.zeros((1, H), dtype=f32)
    c_t = jnp.zeros((1, H), dtype=f32)
    zacc = jnp.zeros((1, H), dtype=f32)                  # deferred out_fn accum
    # TODO(synk): stage whh in the MXU weight registers once via
    #   pltpu.matmul_push_rhs + per-step matmul_acc_lhs/matmul_pop (MRB overlap
    #   on v7x) to avoid re-streaming the constant RHS on each serial step.
    for t in range(S):                                   # static unroll (S=8)
        gates = xproj[t:t + 1, :] + jnp.dot(h_t, whh, preferred_element_type=f32)
        sig = jax.nn.sigmoid(gates)                      # one EUP pass on [1,4H]
        tnh = jnp.tanh(gates)                            # one EUP pass on [1,4H]
        c_t = sig[:, H:2 * H] * c_t + sig[:, 0:H] * tnh[:, 2 * H:3 * H]
        h_t = sig[:, 3 * H:4 * H] * jnp.tanh(c_t)
        zacc = zacc + h_t * ow2[t:t + 1, :]              # VPU FMA, off MXU path

    # ---- folded (out_fn o out_fn2) -> sigmoid ------------------------------
    z = jnp.sum(zacc, axis=-1, keepdims=True) + sec("ob2")        # [1, 1]
    # Lane-dense output block: broadcast the scalar across 128 lanes so the
    # store is an unmasked full-lane vst; wrapper slices lane 0.
    out_ref[...] = jnp.broadcast_to(
        jax.nn.sigmoid(z).reshape(1, 1, 1), (1, 1, 128))


def make_discriminator(layout, slab_shape, *, seq_len, hidden_size, input_size,
                       stat_size=4, vel_size=4):
    """Build jitted forward callables. `slab` is passed in ready-made (cached)."""
    kernel = functools.partial(
        discriminator_kernel, layout=layout, seq_len=seq_len,
        hidden_size=hidden_size, input_size=input_size,
        stat_size=stat_size, vel_size=vel_size)
    rows, cols = slab_shape

    @jax.jit
    def forward_batched(stat_b, vel_b, slab):
        B = stat_b.shape[0]
        out = pl.pallas_call(
            kernel,
            grid=(B,),
            out_shape=jax.ShapeDtypeStruct((B, 1, 128), jnp.float32),
            in_specs=[
                pl.BlockSpec((1, seq_len, stat_size), lambda b: (b, 0, 0)),
                pl.BlockSpec((1, seq_len, vel_size), lambda b: (b, 0, 0)),
                # Weight slab: whole array, block index constant across the
                # grid -> fetched once, resident in VMEM for all batch items.
                pl.BlockSpec((rows, cols), lambda b: (0, 0)),
            ],
            out_specs=pl.BlockSpec((1, 1, 128), lambda b: (b, 0, 0)),
            compiler_params=pltpu.CompilerParams(
                dimension_semantics=("parallel",)),
        )(stat_b, vel_b, slab)
        return out[:, 0, 0]                              # [B]

    def forward(stat, velocity, slab):
        # Matches the PyTorch forward signature/shape (returns shape [1]).
        return forward_batched(stat[None], velocity[None], slab).reshape(1)

    return forward, forward_batched


def discriminator_ref(stat, velocity, p, *, seq_len, hidden_size):
    """Pure-JAX reference mirroring the (unfolded) PyTorch forward."""
    S, H = seq_len, hidden_size
    att = jax.nn.softmax(velocity @ p["aw_t"] + p["ab"], axis=-1)
    att_stat = stat * att
    cw, cb = p["cw_t"], p["cb"]
    feat = jnp.zeros((S, cw.shape[1]), jnp.float32)
    for h in range(3):
        term = (att_stat[:, h:h + 1] * cw[0:1] + velocity[:, h:h + 1] * cw[1:2]
                + att_stat[:, h + 1:h + 2] * cw[2:3] + velocity[:, h + 1:h + 2] * cw[3:4]
                + cb)
        feat = feat + jnp.maximum(term, 0.0)
    x = feat @ p["lw_t"] + p["lb"]
    xproj = x @ p["wih_t"] + p["bih"] + p["bhh"]
    h_t = jnp.zeros((1, H), jnp.float32)
    c_t = jnp.zeros((1, H), jnp.float32)
    hs = []
    for t in range(S):
        gates = xproj[t:t + 1] + h_t @ p["whh_t"]
        i_g = jax.nn.sigmoid(gates[:, :H])
        f_g = jax.nn.sigmoid(gates[:, H:2 * H])
        g_g = jnp.tanh(gates[:, 2 * H:3 * H])
        o_g = jax.nn.sigmoid(gates[:, 3 * H:])
        c_t = f_g * c_t + i_g * g_g
        h_t = o_g * jnp.tanh(c_t)
        hs.append(h_t)
    flat = jnp.concatenate(hs, axis=1)                       # [1, S*H]
    z = flat @ p["ow_t"] + p["ob"]
    z2 = jnp.sum(z * p["o2w"], axis=-1, keepdims=True) + p["o2b"]
    return jax.nn.sigmoid(z2).reshape(1)


def init_params(key, *, stat_size, vel_size, input_size, lstm_input,
                hidden_size, out_hidden, seq_len):
    """Deterministic PyTorch-style uniform(-1/sqrt(fan_in), 1/sqrt(fan_in)) init."""
    ks = list(jax.random.split(key, 16))

    def u(k, shape, fan_in):
        b = 1.0 / jnp.sqrt(jnp.float32(fan_in))
        return jax.random.uniform(k, shape, jnp.float32, -b, b)

    p = {}
    # attentLinVel: Linear(vel_size -> stat_size)
    p["aw_t"] = u(ks[0], (vel_size, stat_size), vel_size)          # W^T
    p["ab"] = u(ks[1], (1, stat_size), vel_size)
    # velstatCNN: Conv2d(1, input_size, 2) -> weight [C,1,2,2] flattened to [4, C]
    p["cw_t"] = u(ks[2], (4, input_size), 4)                       # fan_in = 1*2*2
    p["cb"] = u(ks[3], (1, input_size), 4)
    # lstm_fn: Linear(input_size -> lstm_input)
    p["lw_t"] = u(ks[4], (input_size, lstm_input), input_size)
    p["lb"] = u(ks[5], (1, lstm_input), input_size)
    # LSTM(lstm_input -> hidden_size), single layer; gate order i,f,g,o
    p["wih_t"] = u(ks[6], (lstm_input, 4 * hidden_size), hidden_size)
    p["whh_t"] = u(ks[7], (hidden_size, 4 * hidden_size), hidden_size)
    p["bih"] = u(ks[8], (1, 4 * hidden_size), hidden_size)
    p["bhh"] = u(ks[9], (1, 4 * hidden_size), hidden_size)
    # out_fn: Linear(hidden_size*seq_len -> out_hidden)
    p["ow_t"] = u(ks[10], (hidden_size * seq_len, out_hidden), hidden_size * seq_len)
    p["ob"] = u(ks[11], (1, out_hidden), hidden_size * seq_len)
    # out_fn2: Linear(out_hidden -> 1), weight kept as [1, OH]
    p["o2w"] = u(ks[12], (1, out_hidden), out_hidden)
    p["o2b"] = u(ks[13], (1, 1), out_hidden)
    return p


if __name__ == "__main__":
    # Small, self-consistent configuration.
    seq_len = 8
    stat_size = 4
    vel_size = 4
    input_size = 8      # conv output channels
    lstm_input = 16
    hidden_size = 32
    out_hidden = 16
    batch = 4

    key = jax.random.PRNGKey(0)
    k_stat, k_vel, k_par = jax.random.split(key, 3)
    stat_b = jax.random.normal(k_stat, (batch, seq_len, stat_size), jnp.float32)
    vel_b = jax.random.normal(k_vel, (batch, seq_len, vel_size), jnp.float32)
    params = init_params(k_par, stat_size=stat_size, vel_size=vel_size,
                         input_size=input_size, lstm_input=lstm_input,
                         hidden_size=hidden_size, out_hidden=out_hidden,
                         seq_len=seq_len)

    # ---- one-time fold + pack (off the per-call path); slab stays on device
    slab, layout = pack_params(
        params, seq_len=seq_len, hidden_size=hidden_size,
        input_size=input_size, stat_size=stat_size, vel_size=vel_size)
    slab = jax.block_until_ready(slab)

    forward, forward_batched = make_discriminator(
        layout, slab.shape, seq_len=seq_len, hidden_size=hidden_size,
        input_size=input_size, stat_size=stat_size, vel_size=vel_size)

    # ---- single-sequence path (matches PyTorch forward: returns shape [1]) -
    out1 = jax.block_until_ready(forward(stat_b[0], vel_b[0], slab))
    ref1 = discriminator_ref(stat_b[0], vel_b[0], params,
                             seq_len=seq_len, hidden_size=hidden_size)
    assert out1.shape == (1,), out1.shape
    assert jnp.allclose(out1, ref1, atol=2e-3, rtol=2e-3), (out1, ref1)

    # ---- batched path: one dispatch, leading "parallel" grid axis ----------
    outB = jax.block_until_ready(forward_batched(stat_b, vel_b, slab))
    assert outB.shape == (batch,), outB.shape
    for b in range(batch):
        refb = discriminator_ref(stat_b[b], vel_b[b], params,
                                 seq_len=seq_len, hidden_size=hidden_size)
        assert jnp.allclose(outB[b], refb[0], atol=2e-3, rtol=2e-3), (b, outB[b], refb)

    print("KERNEL_OK")
</pallas_src>

<mosaic_0001>
module attributes {stable_mosaic.version = 11 : i64} {
  func.func @discriminator_kernel(%arg0: i32, %arg1: memref<1x8x4xf32, #tpu.memory_space<vmem>>, %arg2: memref<1x8x4xf32, #tpu.memory_space<vmem>>, %arg3: memref<96x128xf32, #tpu.memory_space<vmem>>, %arg4: memref<1x1x128xf32, #tpu.memory_space<vmem>>) attributes {dimension_semantics = [#tpu.dimension_semantics<parallel>], iteration_bounds = array<i64: 1>, scalar_prefetch = 0 : i64, scratch_operands = 0 : i64, tpu.core_type = #tpu.core_type<tc>, window_params = [{transform_indices = @transform_0, window_bounds = array<i64: 1, 8, 4>}, {transform_indices = @transform_1, window_bounds = array<i64: 1, 8, 4>}, {pipeline_mode = #tpu.pipeline_mode<synchronous>, transform_indices = @transform_2, window_bounds = array<i64: 96, 128>}, {transform_indices = @transform_3, window_bounds = array<i64: 1, 1, 128>}]} {
    %c0 = arith.constant 0 : index
    %c0_0 = arith.constant 0 : index
    %c0_1 = arith.constant 0 : index
    %0 = vector.load %arg1[%c0, %c0_0, %c0_1] : memref<1x8x4xf32, #tpu.memory_space<vmem>>, vector<1x8x4xf32>
    %1 = vector.shape_cast %0 : vector<1x8x4xf32> to vector<8x4xf32>
    %c0_2 = arith.constant 0 : index
    %c0_3 = arith.constant 0 : index
    %c0_4 = arith.constant 0 : index
    %2 = vector.load %arg2[%c0_2, %c0_3, %c0_4] : memref<1x8x4xf32, #tpu.memory_space<vmem>>, vector<1x8x4xf32>
    %3 = vector.shape_cast %2 : vector<1x8x4xf32> to vector<8x4xf32>
    %c56 = arith.constant 56 : index
    %c0_5 = arith.constant 0 : index
    %4 = vector.load %arg3[%c56, %c0_5] : memref<96x128xf32, #tpu.memory_space<vmem>>, vector<4x4xf32>
    %c64 = arith.constant 64 : index
    %c0_6 = arith.constant 0 : index
    %5 = vector.load %arg3[%c64, %c0_6] : memref<96x128xf32, #tpu.memory_space<vmem>>, vector<1x4xf32>
    %6 = vector.extract_strided_slice %3 {offsets = [0, 0], sizes = [8, 1], strides = [1, 1]} : vector<8x4xf32> to vector<8x1xf32>
    %7 = vector.extract_strided_slice %4 {offsets = [0, 0], sizes = [1, 4], strides = [1, 1]} : vector<4x4xf32> to vector<1x4xf32>
    %8 = vector.broadcast %6 : vector<8x1xf32> to vector<8x4xf32>
    %9 = vector.broadcast %7 : vector<1x4xf32> to vector<8x4xf32>
    %10 = arith.mulf %8, %9 : vector<8x4xf32>
    %11 = vector.broadcast %5 : vector<1x4xf32> to vector<8x4xf32>
    %12 = arith.addf %11, %10 : vector<8x4xf32>
    %13 = vector.extract_strided_slice %3 {offsets = [0, 1], sizes = [8, 1], strides = [1, 1]} : vector<8x4xf32> to vector<8x1xf32>
    %14 = vector.extract_strided_slice %4 {offsets = [1, 0], sizes = [1, 4], strides = [1, 1]} : vector<4x4xf32> to vector<1x4xf32>
    %15 = vector.broadcast %13 : vector<8x1xf32> to vector<8x4xf32>
    %16 = vector.broadcast %14 : vector<1x4xf32> to vector<8x4xf32>
    %17 = arith.mulf %15, %16 : vector<8x4xf32>
    %18 = arith.addf %12, %17 : vector<8x4xf32>
    %19 = vector.extract_strided_slice %3 {offsets = [0, 2], sizes = [8, 1], strides = [1, 1]} : vector<8x4xf32> to vector<8x1xf32>
    %20 = vector.extract_strided_slice %4 {offsets = [2, 0], sizes = [1, 4], strides = [1, 1]} : vector<4x4xf32> to vector<1x4xf32>
    %21 = vector.broadcast %19 : vector<8x1xf32> to vector<8x4xf32>
    %22 = vector.broadcast %20 : vector<1x4xf32> to vector<8x4xf32>
    %23 = arith.mulf %21, %22 : vector<8x4xf32>
    %24 = arith.addf %18, %23 : vector<8x4xf32>
    %25 = vector.extract_strided_slice %3 {offsets = [0, 3], sizes = [8, 1], strides = [1, 1]} : vector<8x4xf32> to vector<8x1xf32>
    %26 = vector.extract_strided_slice %4 {offsets = [3, 0], sizes = [1, 4], strides = [1, 1]} : vector<4x4xf32> to vector<1x4xf32>
    %27 = vector.broadcast %25 : vector<8x1xf32> to vector<8x4xf32>
    %28 = vector.broadcast %26 : vector<1x4xf32> to vector<8x4xf32>
    %29 = arith.mulf %27, %28 : vector<8x4xf32>
    %30 = arith.addf %24, %29 : vector<8x4xf32>
    %cst = arith.constant dense<0xFF800000> : vector<8xf32>
    %31 = vector.multi_reduction <maximumf>, %30, %cst [1] : vector<8x4xf32> to vector<8xf32>
    %32 = vector.shape_cast %31 : vector<8xf32> to vector<8x1xf32>
    %33 = vector.broadcast %32 : vector<8x1xf32> to vector<8x4xf32>
    %34 = arith.subf %30, %33 : vector<8x4xf32>
    %35 = math.exp %34 : vector<8x4xf32>
    %cst_7 = arith.constant dense<0.000000e+00> : vector<8xf32>
    %36 = vector.multi_reduction <add>, %35, %cst_7 [1] : vector<8x4xf32> to vector<8xf32>
    %37 = vector.shape_cast %36 : vector<8xf32> to vector<8x1xf32>
    %38 = tpu.reciprocal %37 {approx = true} : vector<8x1xf32> -> vector<8x1xf32>
    %39 = vector.broadcast %38 : vector<8x1xf32> to vector<8x4xf32>
    %40 = arith.mulf %35, %39 : vector<8x4xf32>
    %41 = arith.mulf %1, %40 : vector<8x4xf32>
    %c72 = arith.constant 72 : index
    %c0_8 = arith.constant 0 : index
    %42 = vector.load %arg3[%c72, %c0_8] : memref<96x128xf32, #tpu.memory_space<vmem>>, vector<4x8xf32>
    %c80 = arith.constant 80 : index
    %c0_9 = arith.constant 0 : index
    %43 = vector.load %arg3[%c80, %c0_9] : memref<96x128xf32, #tpu.memory_space<vmem>>, vector<1x8xf32>
    %44 = vector.shape_cast %43 : vector<1x8xf32> to vector<1x8xf32>
    %45 = vector.broadcast %44 : vector<1x8xf32> to vector<8x8xf32>
    %46 = vector.extract_strided_slice %42 {offsets = [0, 0], sizes = [1, 8], strides = [1, 1]} : vector<4x8xf32> to vector<1x8xf32>
    %47 = vector.shape_cast %46 : vector<1x8xf32> to vector<1x8xf32>
    %48 = vector.broadcast %47 : vector<1x8xf32> to vector<8x8xf32>
    %49 = vector.extract_strided_slice %42 {offsets = [1, 0], sizes = [1, 8], strides = [1, 1]} : vector<4x8xf32> to vector<1x8xf32>
    %50 = vector.shape_cast %49 : vector<1x8xf32> to vector<1x8xf32>
    %51 = vector.broadcast %50 : vector<1x8xf32> to vector<8x8xf32>
    %52 = vector.extract_strided_slice %42 {offsets = [2, 0], sizes = [1, 8], strides = [1, 1]} : vector<4x8xf32> to vector<1x8xf32>
    %53 = vector.shape_cast %52 : vector<1x8xf32> to vector<1x8xf32>
    %54 = vector.broadcast %53 : vector<1x8xf32> to vector<8x8xf32>
    %55 = vector.extract_strided_slice %42 {offsets = [3, 0], sizes = [1, 8], strides = [1, 1]} : vector<4x8xf32> to vector<1x8xf32>
    %56 = vector.shape_cast %55 : vector<1x8xf32> to vector<1x8xf32>
    %57 = vector.broadcast %56 : vector<1x8xf32> to vector<8x8xf32>
    %cst_10 = arith.constant 0.000000e+00 : f32
    %58 = vector.broadcast %cst_10 : f32 to vector<8x8xf32>
    %59 = vector.extract_strided_slice %41 {offsets = [0, 0], sizes = [8, 1], strides = [1, 1]} : vector<8x4xf32> to vector<8x1xf32>
    %60 = vector.broadcast %59 : vector<8x1xf32> to vector<8x8xf32>
    %61 = arith.mulf %60, %48 : vector<8x8xf32>
    %62 = vector.extract_strided_slice %3 {offsets = [0, 0], sizes = [8, 1], strides = [1, 1]} : vector<8x4xf32> to vector<8x1xf32>
    %63 = vector.broadcast %62 : vector<8x1xf32> to vector<8x8xf32>
    %64 = arith.mulf %63, %51 : vector<8x8xf32>
    %65 = arith.addf %61, %64 : vector<8x8xf32>
    %66 = vector.extract_strided_slice %41 {offsets = [0, 1], sizes = [8, 1], strides = [1, 1]} : vector<8x4xf32> to vector<8x1xf32>
    %67 = vector.broadcast %66 : vector<8x1xf32> to vector<8x8xf32>
    %68 = arith.mulf %67, %54 : vector<8x8xf32>
    %69 = arith.addf %65, %68 : vector<8x8xf32>
    %70 = vector.extract_strided_slice %3 {offsets = [0, 1], sizes = [8, 1], strides = [1, 1]} : vector<8x4xf32> to vector<8x1xf32>
    %71 = vector.broadcast %70 : vector<8x1xf32> to vector<8x8xf32>
    %72 = arith.mulf %71, %57 : vector<8x8xf32>
    %73 = arith.addf %69, %72 : vector<8x8xf32>
    %74 = arith.addf %73, %45 : vector<8x8xf32>
    %cst_11 = arith.constant 0.000000e+00 : f32
    %75 = vector.broadcast %cst_11 : f32 to vector<8x8xf32>
    %76 = arith.maximumf %74, %75 : vector<8x8xf32>
    %77 = arith.addf %58, %76 : vector<8x8xf32>
    %78 = vector.extract_strided_slice %41 {offsets = [0, 1], sizes = [8, 1], strides = [1, 1]} : vector<8x4xf32> to vector<8x1xf32>
    %79 = vector.broadcast %78 : vector<8x1xf32> to vector<8x8xf32>
    %80 = arith.mulf %79, %48 : vector<8x8xf32>
    %81 = vector.extract_strided_slice %3 {offsets = [0, 1], sizes = [8, 1], strides = [1, 1]} : vector<8x4xf32> to vector<8x1xf32>
    %82 = vector.broadcast %81 : vector<8x1xf32> to vector<8x8xf32>
    %83 = arith.mulf %82, %51 : vector<8x8xf32>
    %84 = arith.addf %80, %83 : vector<8x8xf32>
    %85 = vector.extract_strided_slice %41 {offsets = [0, 2], sizes = [8, 1], strides = [1, 1]} : vector<8x4xf32> to vector<8x1xf32>
    %86 = vector.broadcast %85 : vector<8x1xf32> to vector<8x8xf32>
    %87 = arith.mulf %86, %54 : vector<8x8xf32>
    %88 = arith.addf %84, %87 : vector<8x8xf32>
    %89 = vector.extract_strided_slice %3 {offsets = [0, 2], sizes = [8, 1], strides = [1, 1]} : vector<8x4xf32> to vector<8x1xf32>
    %90 = vector.broadcast %89 : vector<8x1xf32> to vector<8x8xf32>
    %91 = arith.mulf %90, %57 : vector<8x8xf32>
    %92 = arith.addf %88, %91 : vector<8x8xf32>
    %93 = arith.addf %92, %45 : vector<8x8xf32>
    %cst_12 = arith.constant 0.000000e+00 : f32
    %94 = vector.broadcast %cst_12 : f32 to vector<8x8xf32>
    %95 = arith.maximumf %93, %94 : vector<8x8xf32>
    %96 = arith.addf %77, %95 : vector<8x8xf32>
    %97 = vector.extract_strided_slice %41 {offsets = [0, 2], sizes = [8, 1], strides = [1, 1]} : vector<8x4xf32> to vector<8x1xf32>
    %98 = vector.broadcast %97 : vector<8x1xf32> to vector<8x8xf32>
    %99 = arith.mulf %98, %48 : vector<8x8xf32>
    %100 = vector.extract_strided_slice %3 {offsets = [0, 2], sizes = [8, 1], strides = [1, 1]} : vector<8x4xf32> to vector<8x1xf32>
    %101 = vector.broadcast %100 : vector<8x1xf32> to vector<8x8xf32>
    %102 = arith.mulf %101, %51 : vector<8x8xf32>
    %103 = arith.addf %99, %102 : vector<8x8xf32>
    %104 = vector.extract_strided_slice %41 {offsets = [0, 3], sizes = [8, 1], strides = [1, 1]} : vector<8x4xf32> to vector<8x1xf32>
    %105 = vector.broadcast %104 : vector<8x1xf32> to vector<8x8xf32>
    %106 = arith.mulf %105, %54 : vector<8x8xf32>
    %107 = arith.addf %103, %106 : vector<8x8xf32>
    %108 = vector.extract_strided_slice %3 {offsets = [0, 3], sizes = [8, 1], strides = [1, 1]} : vector<8x4xf32> to vector<8x1xf32>
    %109 = vector.broadcast %108 : vector<8x1xf32> to vector<8x8xf32>
    %110 = arith.mulf %109, %57 : vector<8x8xf32>
    %111 = arith.addf %107, %110 : vector<8x8xf32>
    %112 = arith.addf %111, %45 : vector<8x8xf32>
    %cst_13 = arith.constant 0.000000e+00 : f32
    %113 = vector.broadcast %cst_13 : f32 to vector<8x8xf32>
    %114 = arith.maximumf %112, %113 : vector<8x8xf32>
    %115 = arith.addf %96, %114 : vector<8x8xf32>
    %c0_14 = arith.constant 0 : index
    %c0_15 = arith.constant 0 : index
    %116 = vector.load %arg3[%c0_14, %c0_15] : memref<96x128xf32, #tpu.memory_space<vmem>>, vector<8x128xf32>
    %cst_16 = arith.constant dense<0.000000e+00> : vector<8x128xf32>
    %117 = tpu.matmul %115, %116, %cst_16 {dimension_numbers = #tpu.dot_dimension_numbers<[1], [0], [0], [1], [0, 0, 1, 1], [], []>} : vector<8x8xf32>, vector<8x128xf32>, vector<8x128xf32> -> vector<8x128xf32>
    %c40 = arith.constant 40 : index
    %c0_17 = arith.constant 0 : index
    %118 = vector.load %arg3[%c40, %c0_17] : memref<96x128xf32, #tpu.memory_space<vmem>>, vector<1x128xf32>
    %119 = vector.broadcast %118 : vector<1x128xf32> to vector<8x128xf32>
    %120 = arith.addf %117, %119 : vector<8x128xf32>
    %c8 = arith.constant 8 : index
    %c0_18 = arith.constant 0 : index
    %121 = vector.load %arg3[%c8, %c0_18] : memref<96x128xf32, #tpu.memory_space<vmem>>, vector<32x128xf32>
    %c48 = arith.constant 48 : index
    %c0_19 = arith.constant 0 : index
    %122 = vector.load %arg3[%c48, %c0_19] : memref<96x128xf32, #tpu.memory_space<vmem>>, vector<8x32xf32>
    %cst_20 = arith.constant 0.000000e+00 : f32
    %123 = vector.broadcast %cst_20 : f32 to vector<1x32xf32>
    %cst_21 = arith.constant 0.000000e+00 : f32
    %124 = vector.broadcast %cst_21 : f32 to vector<1x32xf32>
    %cst_22 = arith.constant 0.000000e+00 : f32
    %125 = vector.broadcast %cst_22 : f32 to vector<1x32xf32>
    %126 = vector.extract_strided_slice %120 {offsets = [0, 0], sizes = [1, 128], strides = [1, 1]} : vector<8x128xf32> to vector<1x128xf32>
    %cst_23 = arith.constant dense<0.000000e+00> : vector<1x128xf32>
    %127 = tpu.matmul %123, %121, %cst_23 {dimension_numbers = #tpu.dot_dimension_numbers<[1], [0], [0], [1], [0, 0, 1, 1], [], []>} : vector<1x32xf32>, vector<32x128xf32>, vector<1x128xf32> -> vector<1x128xf32>
    %128 = arith.addf %126, %127 : vector<1x128xf32>
    %129 = arith.negf %128 : vector<1x128xf32>
    %130 = math.exp %129 : vector<1x128xf32>
    %cst_24 = arith.constant 1.000000e+00 : f32
    %131 = vector.broadcast %cst_24 : f32 to vector<1x128xf32>
    %132 = arith.addf %131, %130 : vector<1x128xf32>
    %133 = arith.divf %131, %132 : vector<1x128xf32>
    %134 = math.tanh %128 : vector<1x128xf32>
    %135 = vector.extract_strided_slice %133 {offsets = [0, 32], sizes = [1, 32], strides = [1, 1]} : vector<1x128xf32> to vector<1x32xf32>
    %136 = arith.mulf %135, %124 : vector<1x32xf32>
    %137 = vector.extract_strided_slice %133 {offsets = [0, 0], sizes = [1, 32], strides = [1, 1]} : vector<1x128xf32> to vector<1x32xf32>
    %138 = vector.extract_strided_slice %134 {offsets = [0, 64], sizes = [1, 32], strides = [1, 1]} : vector<1x128xf32> to vector<1x32xf32>
    %139 = arith.mulf %137, %138 : vector<1x32xf32>
    %140 = arith.addf %136, %139 : vector<1x32xf32>
    %141 = vector.extract_strided_slice %133 {offsets = [0, 96], sizes = [1, 32], strides = [1, 1]} : vector<1x128xf32> to vector<1x32xf32>
    %142 = math.tanh %140 : vector<1x32xf32>
    %143 = arith.mulf %141, %142 : vector<1x32xf32>
    %144 = vector.extract_strided_slice %122 {offsets = [0, 0], sizes = [1, 32], strides = [1, 1]} : vector<8x32xf32> to vector<1x32xf32>
    %145 = arith.mulf %143, %144 : vector<1x32xf32>
    %146 = arith.addf %125, %145 : vector<1x32xf32>
    %147 = vector.extract_strided_slice %120 {offsets = [1, 0], sizes = [1, 128], strides = [1, 1]} : vector<8x128xf32> to vector<1x128xf32>
    %cst_25 = arith.constant dense<0.000000e+00> : vector<1x128xf32>
    %148 = tpu.matmul %143, %121, %cst_25 {dimension_numbers = #tpu.dot_dimension_numbers<[1], [0], [0], [1], [0, 0, 1, 1], [], []>} : vector<1x32xf32>, vector<32x128xf32>, vector<1x128xf32> -> vector<1x128xf32>
    %149 = arith.addf %147, %148 : vector<1x128xf32>
    %150 = arith.negf %149 : vector<1x128xf32>
    %151 = math.exp %150 : vector<1x128xf32>
    %cst_26 = arith.constant 1.000000e+00 : f32
    %152 = vector.broadcast %cst_26 : f32 to vector<1x128xf32>
    %153 = arith.addf %152, %151 : vector<1x128xf32>
    %154 = arith.divf %152, %153 : vector<1x128xf32>
    %155 = math.tanh %149 : vector<1x128xf32>
    %156 = vector.extract_strided_slice %154 {offsets = [0, 32], sizes = [1, 32], strides = [1, 1]} : vector<1x128xf32> to vector<1x32xf32>
    %157 = arith.mulf %156, %140 : vector<1x32xf32>
    %158 = vector.extract_strided_slice %154 {offsets = [0, 0], sizes = [1, 32], strides = [1, 1]} : vector<1x128xf32> to vector<1x32xf32>
    %159 = vector.extract_strided_slice %155 {offsets = [0, 64], sizes = [1, 32], strides = [1, 1]} : vector<1x128xf32> to vector<1x32xf32>
    %160 = arith.mulf %158, %159 : vector<1x32xf32>
    %161 = arith.addf %157, %160 : vector<1x32xf32>
    %162 = vector.extract_strided_slice %154 {offsets = [0, 96], sizes = [1, 32], strides = [1, 1]} : vector<1x128xf32> to vector<1x32xf32>
    %163 = math.tanh %161 : vector<1x32xf32>
    %164 = arith.mulf %162, %163 : vector<1x32xf32>
    %165 = vector.extract_strided_slice %122 {offsets = [1, 0], sizes = [1, 32], strides = [1, 1]} : vector<8x32xf32> to vector<1x32xf32>
    %166 = arith.mulf %164, %165 : vector<1x32xf32>
    %167 = arith.addf %146, %166 : vector<1x32xf32>
    %168 = vector.extract_strided_slice %120 {offsets = [2, 0], sizes = [1, 128], strides = [1, 1]} : vector<8x128xf32> to vector<1x128xf32>
    %cst_27 = arith.constant dense<0.000000e+00> : vector<1x128xf32>
    %169 = tpu.matmul %164, %121, %cst_27 {dimension_numbers = #tpu.dot_dimension_numbers<[1], [0], [0], [1], [0, 0, 1, 1], [], []>} : vector<1x32xf32>, vector<32x128xf32>, vector<1x128xf32> -> vector<1x128xf32>
    %170 = arith.addf %168, %169 : vector<1x128xf32>
    %171 = arith.negf %170 : vector<1x128xf32>
    %172 = math.exp %171 : vector<1x128xf32>
    %cst_28 = arith.constant 1.000000e+00 : f32
    %173 = vector.broadcast %cst_28 : f32 to vector<1x128xf32>
    %174 = arith.addf %173, %172 : vector<1x128xf32>
    %175 = arith.divf %173, %174 : vector<1x128xf32>
    %176 = math.tanh %170 : vector<1x128xf32>
    %177 = vector.extract_strided_slice %175 {offsets = [0, 32], sizes = [1, 32], strides = [1, 1]} : vector<1x128xf32> to vector<1x32xf32>
    %178 = arith.mulf %177, %161 : vector<1x32xf32>
    %179 = vector.extract_strided_slice %175 {offsets = [0, 0], sizes = [1, 32], strides = [1, 1]} : vector<1x128xf32> to vector<1x32xf32>
    %180 = vector.extract_strided_slice %176 {offsets = [0, 64], sizes = [1, 32], strides = [1, 1]} : vector<1x128xf32> to vector<1x32xf32>
    %181 = arith.mulf %179, %180 : vector<1x32xf32>
    %182 = arith.addf %178, %181 : vector<1x32xf32>
    %183 = vector.extract_strided_slice %175 {offsets = [0, 96], sizes = [1, 32], strides = [1, 1]} : vector<1x128xf32> to vector<1x32xf32>
    %184 = math.tanh %182 : vector<1x32xf32>
    %185 = arith.mulf %183, %184 : vector<1x32xf32>
    %186 = vector.extract_strided_slice %122 {offsets = [2, 0], sizes = [1, 32], strides = [1, 1]} : vector<8x32xf32> to vector<1x32xf32>
    %187 = arith.mulf %185, %186 : vector<1x32xf32>
    %188 = arith.addf %167, %187 : vector<1x32xf32>
    %189 = vector.extract_strided_slice %120 {offsets = [3, 0], sizes = [1, 128], strides = [1, 1]} : vector<8x128xf32> to vector<1x128xf32>
    %cst_29 = arith.constant dense<0.000000e+00> : vector<1x128xf32>
    %190 = tpu.matmul %185, %121, %cst_29 {dimension_numbers = #tpu.dot_dimension_numbers<[1], [0], [0], [1], [0, 0, 1, 1], [], []>} : vector<1x32xf32>, vector<32x128xf32>, vector<1x128xf32> -> vector<1x128xf32>
    %191 = arith.addf %189, %190 : vector<1x128xf32>
    %192 = arith.negf %191 : vector<1x128xf32>
    %193 = math.exp %192 : vector<1x128xf32>
    %cst_30 = arith.constant 1.000000e+00 : f32
    %194 = vector.broadcast %cst_30 : f32 to vector<1x128xf32>
    %195 = arith.addf %194, %193 : vector<1x128xf32>
    %196 = arith.divf %194, %195 : vector<1x128xf32>
    %197 = math.tanh %191 : vector<1x128xf32>
    %198 = vector.extract_strided_slice %196 {offsets = [0, 32], sizes = [1, 32], strides = [1, 1]} : vector<1x128xf32> to vector<1x32xf32>
    %199 = arith.mulf %198, %182 : vector<1x32xf32>
    %200 = vector.extract_strided_slice %196 {offsets = [0, 0], sizes = [1, 32], strides = [1, 1]} : vector<1x128xf32> to vector<1x32xf32>
    %201 = vector.extract_strided_slice %197 {offsets = [0, 64], sizes = [1, 32], strides = [1, 1]} : vector<1x128xf32> to vector<1x32xf32>
    %202 = arith.mulf %200, %201 : vector<1x32xf32>
    %203 = arith.addf %199, %202 : vector<1x32xf32>
    %204 = vector.extract_strided_slice %196 {offsets = [0, 96], sizes = [1, 32], strides = [1, 1]} : vector<1x128xf32> to vector<1x32xf32>
    %205 = math.tanh %203 : vector<1x32xf32>
    %206 = arith.mulf %204, %205 : vector<1x32xf32>
    %207 = vector.extract_strided_slice %122 {offsets = [3, 0], sizes = [1, 32], strides = [1, 1]} : vector<8x32xf32> to vector<1x32xf32>
    %208 = arith.mulf %206, %207 : vector<1x32xf32>
    %209 = arith.addf %188, %208 : vector<1x32xf32>
    %210 = vector.extract_strided_slice %120 {offsets = [4, 0], sizes = [1, 128], strides = [1, 1]} : vector<8x128xf32> to vector<1x128xf32>
    %cst_31 = arith.constant dense<0.000000e+00> : vector<1x128xf32>
    %211 = tpu.matmul %206, %121, %cst_31 {dimension_numbers = #tpu.dot_dimension_numbers<[1], [0], [0], [1], [0, 0, 1, 1], [], []>} : vector<1x32xf32>, vector<32x128xf32>, vector<1x128xf32> -> vector<1x128xf32>
    %212 = arith.addf %210, %211 : vector<1x128xf32>
    %213 = arith.negf %212 : vector<1x128xf32>
    %214 = math.exp %213 : vector<1x128xf32>
    %cst_32 = arith.constant 1.000000e+00 : f32
    %215 = vector.broadcast %cst_32 : f32 to vector<1x128xf32>
    %216 = arith.addf %215, %214 : vector<1x128xf32>
    %217 = arith.divf %215, %216 : vector<1x128xf32>
    %218 = math.tanh %212 : vector<1x128xf32>
    %219 = vector.extract_strided_slice %217 {offsets = [0, 32], sizes = [1, 32], strides = [1, 1]} : vector<1x128xf32> to vector<1x32xf32>
    %220 = arith.mulf %219, %203 : vector<1x32xf32>
    %221 = vector.extract_strided_slice %217 {offsets = [0, 0], sizes = [1, 32], strides = [1, 1]} : vector<1x128xf32> to vector<1x32xf32>
    %222 = vector.extract_strided_slice %218 {offsets = [0, 64], sizes = [1, 32], strides = [1, 1]} : vector<1x128xf32> to vector<1x32xf32>
    %223 = arith.mulf %221, %222 : vector<1x32xf32>
    %224 = arith.addf %220, %223 : vector<1x32xf32>
    %225 = vector.extract_strided_slice %217 {offsets = [0, 96], sizes = [1, 32], strides = [1, 1]} : vector<1x128xf32> to vector<1x32xf32>
    %226 = math.tanh %224 : vector<1x32xf32>
    %227 = arith.mulf %225, %226 : vector<1x32xf32>
    %228 = vector.extract_strided_slice %122 {offsets = [4, 0], sizes = [1, 32], strides = [1, 1]} : vector<8x32xf32> to vector<1x32xf32>
    %229 = arith.mulf %227, %228 : vector<1x32xf32>
    %230 = arith.addf %209, %229 : vector<1x32xf32>
    %231 = vector.extract_strided_slice %120 {offsets = [5, 0], sizes = [1, 128], strides = [1, 1]} : vector<8x128xf32> to vector<1x128xf32>
    %cst_33 = arith.constant dense<0.000000e+00> : vector<1x128xf32>
    %232 = tpu.matmul %227, %121, %cst_33 {dimension_numbers = #tpu.dot_dimension_numbers<[1], [0], [0], [1], [0, 0, 1, 1], [], []>} : vector<1x32xf32>, vector<32x128xf32>, vector<1x128xf32> -> vector<1x128xf32>
    %233 = arith.addf %231, %232 : vector<1x128xf32>
    %234 = arith.negf %233 : vector<1x128xf32>
    %235 = math.exp %234 : vector<1x128xf32>
    %cst_34 = arith.constant 1.000000e+00 : f32
    %236 = vector.broadcast %cst_34 : f32 to vector<1x128xf32>
    %237 = arith.addf %236, %235 : vector<1x128xf32>
    %238 = arith.divf %236, %237 : vector<1x128xf32>
    %239 = math.tanh %233 : vector<1x128xf32>
    %240 = vector.extract_strided_slice %238 {offsets = [0, 32], sizes = [1, 32], strides = [1, 1]} : vector<1x128xf32> to vector<1x32xf32>
    %241 = arith.mulf %240, %224 : vector<1x32xf32>
    %242 = vector.extract_strided_slice %238 {offsets = [0, 0], sizes = [1, 32], strides = [1, 1]} : vector<1x128xf32> to vector<1x32xf32>
    %243 = vector.extract_strided_slice %239 {offsets = [0, 64], sizes = [1, 32], strides = [1, 1]} : vector<1x128xf32> to vector<1x32xf32>
    %244 = arith.mulf %242, %243 : vector<1x32xf32>
    %245 = arith.addf %241, %244 : vector<1x32xf32>
    %246 = vector.extract_strided_slice %238 {offsets = [0, 96], sizes = [1, 32], strides = [1, 1]} : vector<1x128xf32> to vector<1x32xf32>
    %247 = math.tanh %245 : vector<1x32xf32>
    %248 = arith.mulf %246, %247 : vector<1x32xf32>
    %249 = vector.extract_strided_slice %122 {offsets = [5, 0], sizes = [1, 32], strides = [1, 1]} : vector<8x32xf32> to vector<1x32xf32>
    %250 = arith.mulf %248, %249 : vector<1x32xf32>
    %251 = arith.addf %230, %250 : vector<1x32xf32>
    %252 = vector.extract_strided_slice %120 {offsets = [6, 0], sizes = [1, 128], strides = [1, 1]} : vector<8x128xf32> to vector<1x128xf32>
    %cst_35 = arith.constant dense<0.000000e+00> : vector<1x128xf32>
    %253 = tpu.matmul %248, %121, %cst_35 {dimension_numbers = #tpu.dot_dimension_numbers<[1], [0], [0], [1], [0, 0, 1, 1], [], []>} : vector<1x32xf32>, vector<32x128xf32>, vector<1x128xf32> -> vector<1x128xf32>
    %254 = arith.addf %252, %253 : vector<1x128xf32>
    %255 = arith.negf %254 : vector<1x128xf32>
    %256 = math.exp %255 : vector<1x128xf32>
    %cst_36 = arith.constant 1.000000e+00 : f32
    %257 = vector.broadcast %cst_36 : f32 to vector<1x128xf32>
    %258 = arith.addf %257, %256 : vector<1x128xf32>
    %259 = arith.divf %257, %258 : vector<1x128xf32>
    %260 = math.tanh %254 : vector<1x128xf32>
    %261 = vector.extract_strided_slice %259 {offsets = [0, 32], sizes = [1, 32], strides = [1, 1]} : vector<1x128xf32> to vector<1x32xf32>
    %262 = arith.mulf %261, %245 : vector<1x32xf32>
    %263 = vector.extract_strided_slice %259 {offsets = [0, 0], sizes = [1, 32], strides = [1, 1]} : vector<1x128xf32> to vector<1x32xf32>
    %264 = vector.extract_strided_slice %260 {offsets = [0, 64], sizes = [1, 32], strides = [1, 1]} : vector<1x128xf32> to vector<1x32xf32>
    %265 = arith.mulf %263, %264 : vector<1x32xf32>
    %266 = arith.addf %262, %265 : vector<1x32xf32>
    %267 = vector.extract_strided_slice %259 {offsets = [0, 96], sizes = [1, 32], strides = [1, 1]} : vector<1x128xf32> to vector<1x32xf32>
    %268 = math.tanh %266 : vector<1x32xf32>
    %269 = arith.mulf %267, %268 : vector<1x32xf32>
    %270 = vector.extract_strided_slice %122 {offsets = [6, 0], sizes = [1, 32], strides = [1, 1]} : vector<8x32xf32> to vector<1x32xf32>
    %271 = arith.mulf %269, %270 : vector<1x32xf32>
    %272 = arith.addf %251, %271 : vector<1x32xf32>
    %273 = vector.extract_strided_slice %120 {offsets = [7, 0], sizes = [1, 128], strides = [1, 1]} : vector<8x128xf32> to vector<1x128xf32>
    %cst_37 = arith.constant dense<0.000000e+00> : vector<1x128xf32>
    %274 = tpu.matmul %269, %121, %cst_37 {dimension_numbers = #tpu.dot_dimension_numbers<[1], [0], [0], [1], [0, 0, 1, 1], [], []>} : vector<1x32xf32>, vector<32x128xf32>, vector<1x128xf32> -> vector<1x128xf32>
    %275 = arith.addf %273, %274 : vector<1x128xf32>
    %276 = arith.negf %275 : vector<1x128xf32>
    %277 = math.exp %276 : vector<1x128xf32>
    %cst_38 = arith.constant 1.000000e+00 : f32
    %278 = vector.broadcast %cst_38 : f32 to vector<1x128xf32>
    %279 = arith.addf %278, %277 : vector<1x128xf32>
    %280 = arith.divf %278, %279 : vector<1x128xf32>
    %281 = math.tanh %275 : vector<1x128xf32>
    %282 = vector.extract_strided_slice %280 {offsets = [0, 32], sizes = [1, 32], strides = [1, 1]} : vector<1x128xf32> to vector<1x32xf32>
    %283 = arith.mulf %282, %266 : vector<1x32xf32>
    %284 = vector.extract_strided_slice %280 {offsets = [0, 0], sizes = [1, 32], strides = [1, 1]} : vector<1x128xf32> to vector<1x32xf32>
    %285 = vector.extract_strided_slice %281 {offsets = [0, 64], sizes = [1, 32], strides = [1, 1]} : vector<1x128xf32> to vector<1x32xf32>
    %286 = arith.mulf %284, %285 : vector<1x32xf32>
    %287 = arith.addf %283, %286 : vector<1x32xf32>
    %288 = vector.extract_strided_slice %280 {offsets = [0, 96], sizes = [1, 32], strides = [1, 1]} : vector<1x128xf32> to vector<1x32xf32>
    %289 = math.tanh %287 : vector<1x32xf32>
    %290 = arith.mulf %288, %289 : vector<1x32xf32>
    %291 = vector.extract_strided_slice %122 {offsets = [7, 0], sizes = [1, 32], strides = [1, 1]} : vector<8x32xf32> to vector<1x32xf32>
    %292 = arith.mulf %290, %291 : vector<1x32xf32>
    %293 = arith.addf %272, %292 : vector<1x32xf32>
    %cst_39 = arith.constant dense<0.000000e+00> : vector<1xf32>
    %294 = vector.multi_reduction <add>, %293, %cst_39 [1] : vector<1x32xf32> to vector<1xf32>
    %295 = vector.shape_cast %294 : vector<1xf32> to vector<1x1xf32>
    %c88 = arith.constant 88 : index
    %c0_40 = arith.constant 0 : index
    %296 = vector.load %arg3[%c88, %c0_40] : memref<96x128xf32, #tpu.memory_space<vmem>>, vector<1x1xf32>
    %297 = arith.addf %295, %296 : vector<1x1xf32>
    %298 = arith.negf %297 : vector<1x1xf32>
    %299 = math.exp %298 : vector<1x1xf32>
    %cst_41 = arith.constant 1.000000e+00 : f32
    %300 = vector.broadcast %cst_41 : f32 to vector<1x1xf32>
    %301 = arith.addf %300, %299 : vector<1x1xf32>
    %302 = arith.divf %300, %301 : vector<1x1xf32>
    %303 = vector.shape_cast %302 : vector<1x1xf32> to vector<1x1x1xf32>
    %304 = vector.shape_cast %303 : vector<1x1x1xf32> to vector<1x1x1xf32>
    %305 = vector.broadcast %304 : vector<1x1x1xf32> to vector<1x1x128xf32>
    %c0_42 = arith.constant 0 : index
    %c0_43 = arith.constant 0 : index
    %c0_44 = arith.constant 0 : index
    %306 = vector.load %arg4[%c0_42, %c0_43, %c0_44] : memref<1x1x128xf32, #tpu.memory_space<vmem>>, vector<1x1x128xf32>
    tpu.vector_store %arg4[%c0_42, %c0_43, %c0_44], %305 {strides = array<i32>} : memref<1x1x128xf32, #tpu.memory_space<vmem>>, vector<1x1x128xf32>,
    return
  }
  func.func @transform_0(%arg0: i32) -> (i32, i32, i32) {
    %c0_i32 = arith.constant 0 : i32
    %c0_i32_0 = arith.constant 0 : i32
    %c0_i32_1 = arith.constant 0 : i32
    return %arg0, %c0_i32, %c0_i32_0 : i32, i32, i32
  }
  func.func @transform_1(%arg0: i32) -> (i32, i32, i32) {
    %c0_i32 = arith.constant 0 : i32
    %c0_i32_0 = arith.constant 0 : i32
    %c0_i32_1 = arith.constant 0 : i32
    return %arg0, %c0_i32, %c0_i32_0 : i32, i32, i32
  }
  func.func @transform_2(%arg0: i32) -> (i32, i32) {
    %c0_i32 = arith.constant 0 : i32
    %c0_i32_0 = arith.constant 0 : i32
    %c0_i32_1 = arith.constant 0 : i32
    return %c0_i32, %c0_i32_0 : i32, i32
  }
  func.func @transform_3(%arg0: i32) -> (i32, i32, i32) {
    %c0_i32 = arith.constant 0 : i32
    %c0_i32_0 = arith.constant 0 : i32
    %c0_i32_1 = arith.constant 0 : i32
    return %arg0, %c0_i32, %c0_i32_0 : i32, i32, i32
  }
}

</mosaic_0001>

<llo_original>
// kernel: forward_batched.1
$region0: #{forward_batched.1}
  #allocation0 [shape = 'u32[]', space=smem, size = 0x4, offset = 0x4, fixed_abs, tag = 'smem constant byte address 0x4 - core index']
  #allocation1 [shape = 'u32[144,128]{1,0:T(1,128)}', space=vmem, size = 0x12000, scoped, tag = 'internal scratch']
  %s0 = inlined_call_operand.vmem [shape: f32[1,8,4], index: 0, kind: input, shape index: {}]
  %s1 = inlined_call_operand.vmem [shape: f32[1,8,4], index: 1, kind: input, shape index: {}]
  %s2 = inlined_call_operand.hbm [shape: f32[96,128], index: 2, kind: input, shape index: {}]
  %s3 = inlined_call_operand.hbm [shape: f32[1,1,128], index: 3, kind: output, shape index: {}]
  %s4 = sld [smem:[#allocation0]]
  $region26: #{forward_batched.1} parent=0
    _
  %s6 = ssub.s32 1, %s4
  %s7 = scalar_select 0, %s6, %s4
  $region1: #{forward_batched.1} parent=0
    #allocation2 [shape = 'u8[49152]{0}', space=vmem, size = 0xc000, scoped, tag = 'input window, operand 2, single buffered']
    #allocation3 [shape = 's32[1]{0}', space=sflag, size = 0x4, scoped, tag = 'scoped memory for forward_batched.1']
    #allocation4 [shape = 's32[1]{0}', space=sflag, size = 0x4, scoped, tag = 'scoped memory for forward_batched.1']
    #allocation5 [shape = 'u8[512]{0}', space=vmem, size = 0x400, scoped, tag = 'output window, operand 0, single buffered']
    %8 = vsyncpa [#allocation3], 0
    %9 = vsyncpa [#allocation4], 0
    // Predicated region
    $region2: #{forward_batched.1} parent=1 // pred_check
      _
    $region3: #{forward_batched.1} parent=1 // pred_check_branch
      %11 = sbr.rel (0) target = $region5
    $region4: #{forward_batched.1} parent=1 // pred_region
      _
    $region5: #{forward_batched.1} parent=1 // pred_fallthru
      _
    // Predicated region
    $region6: #{forward_batched.1} parent=1 // pred_check
      _
    $region7: #{forward_batched.1} parent=1 // pred_check_branch
      %13 = sbr.rel (0) target = $region9
    $region8: #{forward_batched.1} parent=1 // pred_region
      _
    $region9: #{forward_batched.1} parent=1 // pred_fallthru
      _
    // Predicated region
    $region10: #{forward_batched.1} parent=1 // pred_check
      _
    $region11: #{forward_batched.1} parent=1 // pred_check_branch
      %15 = sbr.rel (0) target = $region13
    $region12: #{forward_batched.1} parent=1 // pred_region
      %s17 = ssub.s32 1536, 1536
      %18 = vsyncadd [#allocation3], %s17
      %s19 = sshll.u32 [#allocation2], 4
      %s20 = int_to_ptr.vmem [resolvable:$true] %s19
      %25 = dma.hbm_to_vmem [thread:$0]  %s2, 1536, %s20, [#allocation3], 128, 128, 8
    $region13: #{forward_batched.1} parent=1 // pred_fallthru
      _
    // Predicated region
    $region14: #{forward_batched.1} parent=1 // pred_check
      _
    $region15: #{forward_batched.1} parent=1 // pred_check_branch
      %27 = sbr.rel (0) target = $region17
    $region16: #{forward_batched.1} parent=1 // pred_region
      %28 = dma.done [#allocation3], 1536
    $region17: #{forward_batched.1} parent=1 // pred_fallthru
      _
    %v29 = vld [vmem:[%s0] sm:$0xff]
    %v30 = vld [vmem:[%s1] sm:$0xff]
    %v31 = vld [vmem:[#allocation2 + $0x38] sm:$0xf]
    %v32 = vld [vmem:[#allocation2 + $0x40] sm:$0x1]
    %34 = vset.pattern.permute.xlu0 0
    %35 = vperm.xlu0 %34, %v30
    %v36 = vpop.permute.xlu0 %35
    %v38 = vlaneseq
    %v39 = vshrl.u32 %v38, 7
    %v40 = vsub.s32 0, %v39
    %v41 = vrot.slane %v31, %v40
    %v42 = vmul.f32 %v36, %v41
    %v43 = vlaneseq
    %v44 = vshrl.u32 %v43, 7
    %v45 = vsub.s32 0, %v44
    %v46 = vrot.slane %v32, %v45
    %v47 = vadd.f32 %v46, %v42
    %48 = vset.pattern.permute.xlu0 1
    %49 = vperm.xlu0 %48, %v30
    %v50 = vpop.permute.xlu0 %49
    %v52 = vlaneseq
    %v53 = vshrl.u32 %v52, 7
    %v54 = vsub.s32 1, %v53
    %v55 = vrot.slane %v31, %v54
    %v56 = vmul.f32 %v50, %v55
    %v57 = vadd.f32 %v47, %v56
    %58 = vset.pattern.permute.xlu0 2
    %59 = vperm.xlu0 %58, %v30
    %v60 = vpop.permute.xlu0 %59
    %v62 = vlaneseq
    %v63 = vshrl.u32 %v62, 7
    %v64 = vsub.s32 2, %v63
    %v65 = vrot.slane %v31, %v64
    %v66 = vmul.f32 %v60, %v65
    %v67 = vadd.f32 %v57, %v66
    %68 = vset.pattern.permute.xlu0 3
    %69 = vperm.xlu0 %68, %v30
    %v70 = vpop.permute.xlu0 %69
    %v72 = vlaneseq
    %v73 = vshrl.u32 %v72, 7
    %v74 = vsub.s32 3, %v73
    %v75 = vrot.slane %v31, %v74
    %v76 = vmul.f32 %v70, %v75
    %v77 = vadd.f32 %v67, %v76
    %vm78 = vcmask 31744
    %v79 = vsel %vm78, %v77, -inf
    %80 = vmax.xlane.f32.xlu0 %v79
    %v81 = vpop.xlane.xlu0 %80
    %v82 = vsub.f32 %v77, %v81
    %v83 = vmul.f32 %v82, 1.442695
    %v84 = vpow.pop %v83
    %v85 = vsel %vm78, %v84, 0.0
    %86 = vadd.xlane.f32.xlu0 %v85
    %v87 = vpop.xlane.xlu0 %86
    %v88 = vrcp.pop %v87
    %v89 = vmul.f32 %v84, %v88
    %v90 = vmul.f32 %v29, %v89
    %v91 = vld [vmem:[#allocation2 + $0x48] sm:$0xf]
    %v92 = vld [vmem:[#allocation2 + $0x50] sm:$0x1]
    %v93 = vlaneseq
    %v94 = vshrl.u32 %v93, 7
    %v95 = vsub.s32 0, %v94
    %v96 = vrot.slane %v92, %v95
    %v97 = vlaneseq
    %v98 = vshrl.u32 %v97, 7
    %v99 = vsub.s32 0, %v98
    %v100 = vrot.slane %v91, %v99
    %v101 = vlaneseq
    %v102 = vshrl.u32 %v101, 7
    %v103 = vsub.s32 1, %v102
    %v104 = vrot.slane %v91, %v103
    %v105 = vlaneseq
    %v106 = vshrl.u32 %v105, 7
    %v107 = vsub.s32 2, %v106
    %v108 = vrot.slane %v91, %v107
    %v109 = vlaneseq
    %v110 = vshrl.u32 %v109, 7
    %v111 = vsub.s32 3, %v110
    %v112 = vrot.slane %v91, %v111
    %114 = vset.pattern.permute.xlu0 0
    %115 = vperm.xlu0 %114, %v90
    %v116 = vpop.permute.xlu0 %115
    %v118 = vmul.f32 %v116, %v100
    %v119 = vmul.f32 %v36, %v104
    %v120 = vadd.f32 %v118, %v119
    %121 = vset.pattern.permute.xlu0 1
    %122 = vperm.xlu0 %121, %v90
    %v123 = vpop.permute.xlu0 %122
    %v125 = vmul.f32 %v123, %v108
    %v126 = vadd.f32 %v120, %v125
    %v127 = vmul.f32 %v50, %v112
    %v128 = vadd.f32 %v126, %v127
    %v129 = vadd.f32 %v128, %v96
    %v130 = vmax.f32 %v129, 0.0
    %v131 = vadd.f32 %v130, 0.0
    %v132 = vmul.f32 %v123, %v100
    %v133 = vmul.f32 %v50, %v104
    %v134 = vadd.f32 %v132, %v133
    %135 = vset.pattern.permute.xlu0 2
    %136 = vperm.xlu0 %135, %v90
    %v137 = vpop.permute.xlu0 %136
    %v139 = vmul.f32 %v137, %v108
    %v140 = vadd.f32 %v134, %v139
    %v141 = vmul.f32 %v60, %v112
    %v142 = vadd.f32 %v140, %v141
    %v143 = vadd.f32 %v142, %v96
    %v144 = vmax.f32 %v143, 0.0
    %v145 = vadd.f32 %v131, %v144
    %v146 = vmul.f32 %v137, %v100
    %v147 = vmul.f32 %v60, %v104
    %v148 = vadd.f32 %v146, %v147
    %149 = vset.pattern.permute.xlu0 3
    %150 = vperm.xlu0 %149, %v90
    %v151 = vpop.permute.xlu0 %150
    %v153 = vmul.f32 %v151, %v108
    %v154 = vadd.f32 %v148, %v153
    %v155 = vmul.f32 %v70, %v112
    %v156 = vadd.f32 %v154, %v155
    %v157 = vadd.f32 %v156, %v96
    %v158 = vmax.f32 %v157, 0.0
    %v159 = vadd.f32 %v145, %v158
    %v160 = vld [vmem:[#allocation2] sm:$0xff]
    %v161 = vld [vmem:[#allocation2 + $0x28] sm:$0x1]
    %v162 = vlaneseq
    %v163 = vshrl.u32 %v162, 7
    %v164 = vsub.s32 0, %v163
    %v165 = vrot.slane %v161, %v164
    %vm166 = vcmask 64512
    %v168 = vsel %vm166, %v159, 0
    %170 = vmatprep.subr.mxu0 0.0
    %171 = vmatpush1.msra.mxu0 %v160
    %172 = vmatprep.subr.mxu0 0.0
    %173 = vmatpush1.msra.mxu0 0.0
    %174 = vmatprep.subr.mxu0 0.0
    %175 = vmatpush1.msra.mxu0 0.0
    %176 = vmatprep.subr.mxu0 0.0
    %177 = vmatpush1.msra.mxu0 0.0
    %178 = vmatprep.subr.mxu0 0.0
    %179 = vmatpush1.msra.mxu0 0.0
    %180 = vmatprep.subr.mxu0 0.0
    %181 = vmatpush1.msra.mxu0 0.0
    %182 = vmatprep.subr.mxu0 0.0
    %183 = vmatpush1.msra.mxu0 0.0
    %184 = vmatprep.subr.mxu0 0.0
    %185 = vmatpush1.msra.mxu0 0.0
    %186 = vmatprep.subr.mxu0 0.0
    %187 = vmatpush1.msra.mxu0 0.0
    %188 = vmatprep.subr.mxu0 0.0
    %189 = vmatpush1.msra.mxu0 0.0
    %190 = vmatprep.subr.mxu0 0.0
    %191 = vmatpush1.msra.mxu0 0.0
    %192 = vmatprep.subr.mxu0 0.0
    %193 = vmatpush1.msra.mxu0 0.0
    %194 = vmatprep.subr.mxu0 0.0
    %195 = vmatpush1.msra.mxu0 0.0
    %196 = vmatprep.subr.mxu0 0.0
    %197 = vmatpush1.msra.mxu0 0.0
    %198 = vmatprep.subr.mxu0 0.0
    %199 = vmatpush1.msra.mxu0 0.0
    %200 = vmatprep.subr.mxu0 0.0
    %201 = vmatpush1.msra.mxu0 0.0
    %202 = vmatprep.subr.mxu0 0.0
    %203 = vmatpush1.msra.mxu0 0.0
    %204 = vmatprep.subr.mxu0 0.0
    %205 = vmatpush1.msra.mxu0 0.0
    %206 = vmatprep.subr.mxu0 0.0
    %207 = vmatpush1.msra.mxu0 0.0
    %208 = vmatprep.subr.mxu0 0.0
    %209 = vmatpush1.msra.mxu0 0.0
    %210 = vmatprep.subr.mxu0 0.0
    %211 = vmatpush1.msra.mxu0 0.0
    %212 = vmatprep.subr.mxu0 0.0
    %213 = vmatpush1.msra.mxu0 0.0
    %214 = vmatprep.subr.mxu0 0.0
    %215 = vmatpush1.msra.mxu0 0.0
    %216 = vmatprep.subr.mxu0 0.0
    %217 = vmatpush1.msra.mxu0 0.0
    %218 = vmatprep.subr.mxu0 0.0
    %219 = vmatpush1.msra.mxu0 0.0
    %220 = vmatprep.subr.mxu0 0.0
    %221 = vmatpush1.msra.mxu0 0.0
    %222 = vmatprep.subr.mxu0 0.0
    %223 = vmatpush1.msra.mxu0 0.0
    %224 = vmatprep.subr.mxu0 0.0
    %225 = vmatpush1.msra.mxu0 0.0
    %226 = vmatprep.subr.mxu0 0.0
    %227 = vmatpush1.msra.mxu0 0.0
    %228 = vmatprep.subr.mxu0 0.0
    %229 = vmatpush1.msra.mxu0 0.0
    %230 = vmatprep.subr.mxu0 0.0
    %231 = vmatpush1.msra.mxu0 0.0
    %232 = vmatprep.subr.mxu0 0.0
    %233 = vmatpush1.msra.mxu0 0.0
    %234 = vmatprep.mubr.f32.mxu0 0.0
    %235 = vmatmul.mubr.f32.gmra.mrb[0].mxu0 %v168
    %v236 = vpop.f32.mrb[0].mxu0
    %v237 = vadd.f32 %v165, %v236
    %v238 = vpop.f32.mrb[0].mxu0
    %239 = vdwg.mxu0
    %v240 = vld [vmem:[#allocation2 + $0x8] sm:$0xff]
    %v241 = vld [vmem:[#allocation2 + $0x10] sm:$0xff]
    %v242 = vld [vmem:[#allocation2 + $0x18] sm:$0xff]
    %v243 = vld [vmem:[#allocation2 + $0x20] sm:$0xff]
    %v244 = vld [vmem:[#allocation2 + $0x30] sm:$0xff]
    %vm245 = vcmask 261120
    %v247 = vsel %vm245, 0.0, 0
    %249 = vmatprep.subr.mxu0 0.0
    %250 = vmatpush1.msra.mxu0 %v240
    %251 = vmatprep.subr.mxu0 0.0
    %252 = vmatpush1.msra.mxu0 %v241
    %253 = vmatprep.subr.mxu0 0.0
    %254 = vmatpush1.msra.mxu0 %v242
    %255 = vmatprep.subr.mxu0 0.0
    %256 = vmatpush1.msra.mxu0 %v243
    %257 = vmatprep.subr.mxu0 0.0
    %258 = vmatpush1.msra.mxu0 0.0
    %259 = vmatprep.subr.mxu0 0.0
    %260 = vmatpush1.msra.mxu0 0.0
    %261 = vmatprep.subr.mxu0 0.0
    %262 = vmatpush1.msra.mxu0 0.0
    %263 = vmatprep.subr.mxu0 0.0
    %264 = vmatpush1.msra.mxu0 0.0
    %265 = vmatprep.subr.mxu0 0.0
    %266 = vmatpush1.msra.mxu0 0.0
    %267 = vmatprep.subr.mxu0 0.0
    %268 = vmatpush1.msra.mxu0 0.0
    %269 = vmatprep.subr.mxu0 0.0
    %270 = vmatpush1.msra.mxu0 0.0
    %271 = vmatprep.subr.mxu0 0.0
    %272 = vmatpush1.msra.mxu0 0.0
    %273 = vmatprep.subr.mxu0 0.0
    %274 = vmatpush1.msra.mxu0 0.0
    %275 = vmatprep.subr.mxu0 0.0
    %276 = vmatpush1.msra.mxu0 0.0
    %277 = vmatprep.subr.mxu0 0.0
    %278 = vmatpush1.msra.mxu0 0.0
    %279 = vmatprep.subr.mxu0 0.0
    %280 = vmatpush1.msra.mxu0 0.0
    %281 = vmatprep.subr.mxu0 0.0
    %282 = vmatpush1.msra.mxu0 0.0
    %283 = vmatprep.subr.mxu0 0.0
    %284 = vmatpush1.msra.mxu0 0.0
    %285 = vmatprep.subr.mxu0 0.0
    %286 = vmatpush1.msra.mxu0 0.0
    %287 = vmatprep.subr.mxu0 0.0
    %288 = vmatpush1.msra.mxu0 0.0
    %289 = vmatprep.subr.mxu0 0.0
    %290 = vmatpush1.msra.mxu0 0.0
    %291 = vmatprep.subr.mxu0 0.0
    %292 = vmatpush1.msra.mxu0 0.0
    %293 = vmatprep.subr.mxu0 0.0
    %294 = vmatpush1.msra.mxu0 0.0
    %295 = vmatprep.subr.mxu0 0.0
    %296 = vmatpush1.msra.mxu0 0.0
    %297 = vmatprep.subr.mxu0 0.0
    %298 = vmatpush1.msra.mxu0 0.0
    %299 = vmatprep.subr.mxu0 0.0
    %300 = vmatpush1.msra.mxu0 0.0
    %301 = vmatprep.subr.mxu0 0.0
    %302 = vmatpush1.msra.mxu0 0.0
    %303 = vmatprep.subr.mxu0 0.0
    %304 = vmatpush1.msra.mxu0 0.0
    %305 = vmatprep.subr.mxu0 0.0
    %306 = vmatpush1.msra.mxu0 0.0
    %307 = vmatprep.subr.mxu0 0.0
    %308 = vmatpush1.msra.mxu0 0.0
    %309 = vmatprep.subr.mxu0 0.0
    %310 = vmatpush1.msra.mxu0 0.0
    %311 = vmatprep.subr.mxu0 0.0
    %312 = vmatpush1.msra.mxu0 0.0
    %313 = vmatprep.mubr.f32.mxu0 0.0
    %314 = vmatmul.mubr.f32.gmra.mrb[0].mxu0 %v247
    %v315 = vpop.f32.mrb[0].mxu0
    %v316 = vadd.f32 0.0, %v315
    %v317 = vpop.f32.mrb[0].mxu0
    %318 = vdwg.mxu0
    %v319 = vadd.f32 %v237, %v316
    %v320 = vxor.u32 %v319, 2147483648
    %v321 = vmul.f32 %v320, 1.442695
    %v322 = vpow.pop %v321
    %v323 = vadd.f32 %v322, 1.0
    %v324 = vrcp.pop %v323
    %v325 = vmul.f32 1.0, %v324
    %v326 = vtanh.pop %v319
    %v327 = vmul.f32 %v325, 0.0
    %329 = vrot.lane.b32.xlu0 %v326, 64
    %v330 = vpop.permute.xlu0 %329
    %v332 = vmul.f32 %v325, %v330
    %334 = vrot.lane.b32.xlu0 %v332, 32
    %v335 = vpop.permute.xlu0 %334
    %v337 = vadd.f32 %v327, %v335
    %v338 = vtanh.pop %v337
    %340 = vrot.lane.b32.xlu0 %v338, 64
    %v341 = vpop.permute.xlu0 %340
    %v343 = vmul.f32 %v325, %v341
    %345 = vrot.lane.b32.xlu0 %v244, 96
    %v346 = vpop.permute.xlu0 %345
    %v348 = vmul.f32 %v343, %v346
    %v349 = vadd.f32 %v348, 0.0
    %351 = vrot.lane.b32.xlu0 %v343, 32
    %v352 = vpop.permute.xlu0 %351
    %v353 = vsel %vm245, %v352, 0
    %355 = vmatprep.subr.mxu0 0.0
    %356 = vmatpush1.msra.mxu0 %v240
    %357 = vmatprep.subr.mxu0 0.0
    %358 = vmatpush1.msra.mxu0 %v241
    %359 = vmatprep.subr.mxu0 0.0
    %360 = vmatpush1.msra.mxu0 %v242
    %361 = vmatprep.subr.mxu0 0.0
    %362 = vmatpush1.msra.mxu0 %v243
    %363 = vmatprep.subr.mxu0 0.0
    %364 = vmatpush1.msra.mxu0 0.0
    %365 = vmatprep.subr.mxu0 0.0
    %366 = vmatpush1.msra.mxu0 0.0
    %367 = vmatprep.subr.mxu0 0.0
    %368 = vmatpush1.msra.mxu0 0.0
    %369 = vmatprep.subr.mxu0 0.0
    %370 = vmatpush1.msra.mxu0 0.0
    %371 = vmatprep.subr.mxu0 0.0
    %372 = vmatpush1.msra.mxu0 0.0
    %373 = vmatprep.subr.mxu0 0.0
    %374 = vmatpush1.msra.mxu0 0.0
    %375 = vmatprep.subr.mxu0 0.0
    %376 = vmatpush1.msra.mxu0 0.0
    %377 = vmatprep.subr.mxu0 0.0
    %378 = vmatpush1.msra.mxu0 0.0
    %379 = vmatprep.subr.mxu0 0.0
    %380 = vmatpush1.msra.mxu0 0.0
    %381 = vmatprep.subr.mxu0 0.0
    %382 = vmatpush1.msra.mxu0 0.0
    %383 = vmatprep.subr.mxu0 0.0
    %384 = vmatpush1.msra.mxu0 0.0
    %385 = vmatprep.subr.mxu0 0.0
    %386 = vmatpush1.msra.mxu0 0.0
    %387 = vmatprep.subr.mxu0 0.0
    %388 = vmatpush1.msra.mxu0 0.0
    %389 = vmatprep.subr.mxu0 0.0
    %390 = vmatpush1.msra.mxu0 0.0
    %391 = vmatprep.subr.mxu0 0.0
    %392 = vmatpush1.msra.mxu0 0.0
    %393 = vmatprep.subr.mxu0 0.0
    %394 = vmatpush1.msra.mxu0 0.0
    %395 = vmatprep.subr.mxu0 0.0
    %396 = vmatpush1.msra.mxu0 0.0
    %397 = vmatprep.subr.mxu0 0.0
    %398 = vmatpush1.msra.mxu0 0.0
    %399 = vmatprep.subr.mxu0 0.0
    %400 = vmatpush1.msra.mxu0 0.0
    %401 = vmatprep.subr.mxu0 0.0
    %402 = vmatpush1.msra.mxu0 0.0
    %403 = vmatprep.subr.mxu0 0.0
    %404 = vmatpush1.msra.mxu0 0.0
    %405 = vmatprep.subr.mxu0 0.0
    %406 = vmatpush1.msra.mxu0 0.0
    %407 = vmatprep.subr.mxu0 0.0
    %408 = vmatpush1.msra.mxu0 0.0
    %409 = vmatprep.subr.mxu0 0.0
    %410 = vmatpush1.msra.mxu0 0.0
    %411 = vmatprep.subr.mxu0 0.0
    %412 = vmatpush1.msra.mxu0 0.0
    %413 = vmatprep.subr.mxu0 0.0
    %414 = vmatpush1.msra.mxu0 0.0
    %415 = vmatprep.subr.mxu0 0.0
    %416 = vmatpush1.msra.mxu0 0.0
    %417 = vmatprep.subr.mxu0 0.0
    %418 = vmatpush1.msra.mxu0 0.0
    %419 = vmatprep.mubr.f32.mxu0 0.0
    %420 = vmatmul.mubr.f32.gmra.mrb[0].mxu0 %v353
    %v421 = vpop.f32.mrb[0].mxu0
    %v422 = vadd.f32 0.0, %v421
    %v423 = vpop.f32.mrb[0].mxu0
    %424 = vdwg.mxu0
    %v426 = vrot.slane %v422, 7
    %v428 = vadd.f32 %v237, %v426
    %v429 = vxor.u32 %v428, 2147483648
    %v430 = vmul.f32 %v429, 1.442695
    %v431 = vpow.pop %v430
    %v432 = vadd.f32 %v431, 1.0
    %v433 = vrcp.pop %v432
    %v434 = vmul.f32 1.0, %v433
    %v435 = vtanh.pop %v428
    %v437 = vrot.slane %v337, 7
    %v439 = vmul.f32 %v434, %v437
    %441 = vrot.lane.b32.xlu0 %v435, 64
    %v442 = vpop.permute.xlu0 %441
    %v444 = vmul.f32 %v434, %v442
    %446 = vrot.lane.b32.xlu0 %v444, 32
    %v447 = vpop.permute.xlu0 %446
    %v449 = vadd.f32 %v439, %v447
    %v450 = vtanh.pop %v449
    %452 = vrot.lane.b32.xlu0 %v450, 64
    %v453 = vpop.permute.xlu0 %452
    %v455 = vmul.f32 %v434, %v453
    %v456 = vmul.f32 %v455, %v346
    %v458 = vrot.slane %v456, 1
    %v460 = vadd.f32 %v349, %v458
    %v462 = vrot.slane %v455, 1
    %463 = vrot.lane.b32.xlu0 %v462, 32
    %v464 = vpop.permute.xlu0 %463
    %v465 = vsel %vm245, %v464, 0
    %467 = vmatprep.subr.mxu0 0.0
    %468 = vmatpush1.msra.mxu0 %v240
    %469 = vmatprep.subr.mxu0 0.0
    %470 = vmatpush1.msra.mxu0 %v241
    %471 = vmatprep.subr.mxu0 0.0
    %472 = vmatpush1.msra.mxu0 %v242
    %473 = vmatprep.subr.mxu0 0.0
    %474 = vmatpush1.msra.mxu0 %v243
    %475 = vmatprep.subr.mxu0 0.0
    %476 = vmatpush1.msra.mxu0 0.0
    %477 = vmatprep.subr.mxu0 0.0
    %478 = vmatpush1.msra.mxu0 0.0
    %479 = vmatprep.subr.mxu0 0.0
    %480 = vmatpush1.msra.mxu0 0.0
    %481 = vmatprep.subr.mxu0 0.0
    %482 = vmatpush1.msra.mxu0 0.0
    %483 = vmatprep.subr.mxu0 0.0
    %484 = vmatpush1.msra.mxu0 0.0
    %485 = vmatprep.subr.mxu0 0.0
    %486 = vmatpush1.msra.mxu0 0.0
    %487 = vmatprep.subr.mxu0 0.0
    %488 = vmatpush1.msra.mxu0 0.0
    %489 = vmatprep.subr.mxu0 0.0
    %490 = vmatpush1.msra.mxu0 0.0
    %491 = vmatprep.subr.mxu0 0.0
    %492 = vmatpush1.msra.mxu0 0.0
    %493 = vmatprep.subr.mxu0 0.0
    %494 = vmatpush1.msra.mxu0 0.0
    %495 = vmatprep.subr.mxu0 0.0
    %496 = vmatpush1.msra.mxu0 0.0
    %497 = vmatprep.subr.mxu0 0.0
    %498 = vmatpush1.msra.mxu0 0.0
    %499 = vmatprep.subr.mxu0 0.0
    %500 = vmatpush1.msra.mxu0 0.0
    %501 = vmatprep.subr.mxu0 0.0
    %502 = vmatpush1.msra.mxu0 0.0
    %503 = vmatprep.subr.mxu0 0.0
    %504 = vmatpush1.msra.mxu0 0.0
    %505 = vmatprep.subr.mxu0 0.0
    %506 = vmatpush1.msra.mxu0 0.0
    %507 = vmatprep.subr.mxu0 0.0
    %508 = vmatpush1.msra.mxu0 0.0
    %509 = vmatprep.subr.mxu0 0.0
    %510 = vmatpush1.msra.mxu0 0.0
    %511 = vmatprep.subr.mxu0 0.0
    %512 = vmatpush1.msra.mxu0 0.0
    %513 = vmatprep.subr.mxu0 0.0
    %514 = vmatpush1.msra.mxu0 0.0
    %515 = vmatprep.subr.mxu0 0.0
    %516 = vmatpush1.msra.mxu0 0.0
    %517 = vmatprep.subr.mxu0 0.0
    %518 = vmatpush1.msra.mxu0 0.0
    %519 = vmatprep.subr.mxu0 0.0
    %520 = vmatpush1.msra.mxu0 0.0
    %521 = vmatprep.subr.mxu0 0.0
    %522 = vmatpush1.msra.mxu0 0.0
    %523 = vmatprep.subr.mxu0 0.0
    %524 = vmatpush1.msra.mxu0 0.0
    %525 = vmatprep.subr.mxu0 0.0
    %526 = vmatpush1.msra.mxu0 0.0
    %527 = vmatprep.subr.mxu0 0.0
    %528 = vmatpush1.msra.mxu0 0.0
    %529 = vmatprep.subr.mxu0 0.0
    %530 = vmatpush1.msra.mxu0 0.0
    %531 = vmatprep.mubr.f32.mxu0 0.0
    %532 = vmatmul.mubr.f32.gmra.mrb[0].mxu0 %v465
    %v533 = vpop.f32.mrb[0].mxu0
    %v534 = vadd.f32 0.0, %v533
    %v535 = vpop.f32.mrb[0].mxu0
    %536 = vdwg.mxu0
    %v538 = vrot.slane %v534, 6
    %v540 = vadd.f32 %v237, %v538
    %v541 = vxor.u32 %v540, 2147483648
    %v542 = vmul.f32 %v541, 1.442695
    %v543 = vpow.pop %v542
    %v544 = vadd.f32 %v543, 1.0
    %v545 = vrcp.pop %v544
    %v546 = vmul.f32 1.0, %v545
    %v547 = vtanh.pop %v540
    %v549 = vrot.slane %v449, 7
    %v551 = vmul.f32 %v546, %v549
    %553 = vrot.lane.b32.xlu0 %v547, 64
    %v554 = vpop.permute.xlu0 %553
    %v556 = vmul.f32 %v546, %v554
    %558 = vrot.lane.b32.xlu0 %v556, 32
    %v559 = vpop.permute.xlu0 %558
    %v561 = vadd.f32 %v551, %v559
    %v562 = vtanh.pop %v561
    %564 = vrot.lane.b32.xlu0 %v562, 64
    %v565 = vpop.permute.xlu0 %564
    %v567 = vmul.f32 %v546, %v565
    %v568 = vmul.f32 %v567, %v346
    %v570 = vrot.slane %v568, 2
    %v572 = vadd.f32 %v460, %v570
    %v574 = vrot.slane %v567, 2
    %575 = vrot.lane.b32.xlu0 %v574, 32
    %v576 = vpop.permute.xlu0 %575
    %v577 = vsel %vm245, %v576, 0
    %579 = vmatprep.subr.mxu0 0.0
    %580 = vmatpush1.msra.mxu0 %v240
    %581 = vmatprep.subr.mxu0 0.0
    %582 = vmatpush1.msra.mxu0 %v241
    %583 = vmatprep.subr.mxu0 0.0
    %584 = vmatpush1.msra.mxu0 %v242
    %585 = vmatprep.subr.mxu0 0.0
    %586 = vmatpush1.msra.mxu0 %v243
    %587 = vmatprep.subr.mxu0 0.0
    %588 = vmatpush1.msra.mxu0 0.0
    %589 = vmatprep.subr.mxu0 0.0
    %590 = vmatpush1.msra.mxu0 0.0
    %591 = vmatprep.subr.mxu0 0.0
    %592 = vmatpush1.msra.mxu0 0.0
    %593 = vmatprep.subr.mxu0 0.0
    %594 = vmatpush1.msra.mxu0 0.0
    %595 = vmatprep.subr.mxu0 0.0
    %596 = vmatpush1.msra.mxu0 0.0
    %597 = vmatprep.subr.mxu0 0.0
    %598 = vmatpush1.msra.mxu0 0.0
    %599 = vmatprep.subr.mxu0 0.0
    %600 = vmatpush1.msra.mxu0 0.0
    %601 = vmatprep.subr.mxu0 0.0
    %602 = vmatpush1.msra.mxu0 0.0
    %603 = vmatprep.subr.mxu0 0.0
    %604 = vmatpush1.msra.mxu0 0.0
    %605 = vmatprep.subr.mxu0 0.0
    %606 = vmatpush1.msra.mxu0 0.0
    %607 = vmatprep.subr.mxu0 0.0
    %608 = vmatpush1.msra.mxu0 0.0
    %609 = vmatprep.subr.mxu0 0.0
    %610 = vmatpush1.msra.mxu0 0.0
    %611 = vmatprep.subr.mxu0 0.0
    %612 = vmatpush1.msra.mxu0 0.0
    %613 = vmatprep.subr.mxu0 0.0
    %614 = vmatpush1.msra.mxu0 0.0
    %615 = vmatprep.subr.mxu0 0.0
    %616 = vmatpush1.msra.mxu0 0.0
    %617 = vmatprep.subr.mxu0 0.0
    %618 = vmatpush1.msra.mxu0 0.0
    %619 = vmatprep.subr.mxu0 0.0
    %620 = vmatpush1.msra.mxu0 0.0
    %621 = vmatprep.subr.mxu0 0.0
    %622 = vmatpush1.msra.mxu0 0.0
    %623 = vmatprep.subr.mxu0 0.0
    %624 = vmatpush1.msra.mxu0 0.0
    %625 = vmatprep.subr.mxu0 0.0
    %626 = vmatpush1.msra.mxu0 0.0
    %627 = vmatprep.subr.mxu0 0.0
    %628 = vmatpush1.msra.mxu0 0.0
    %629 = vmatprep.subr.mxu0 0.0
    %630 = vmatpush1.msra.mxu0 0.0
    %631 = vmatprep.subr.mxu0 0.0
    %632 = vmatpush1.msra.mxu0 0.0
    %633 = vmatprep.subr.mxu0 0.0
    %634 = vmatpush1.msra.mxu0 0.0
    %635 = vmatprep.subr.mxu0 0.0
    %636 = vmatpush1.msra.mxu0 0.0
    %637 = vmatprep.subr.mxu0 0.0
    %638 = vmatpush1.msra.mxu0 0.0
    %639 = vmatprep.subr.mxu0 0.0
    %640 = vmatpush1.msra.mxu0 0.0
    %641 = vmatprep.subr.mxu0 0.0
    %642 = vmatpush1.msra.mxu0 0.0
    %643 = vmatprep.mubr.f32.mxu0 0.0
    %644 = vmatmul.mubr.f32.gmra.mrb[0].mxu0 %v577
    %v645 = vpop.f32.mrb[0].mxu0
    %v646 = vadd.f32 0.0, %v645
    %v647 = vpop.f32.mrb[0].mxu0
    %648 = vdwg.mxu0
    %v650 = vrot.slane %v646, 5
    %v652 = vadd.f32 %v237, %v650
    %v653 = vxor.u32 %v652, 2147483648
    %v654 = vmul.f32 %v653, 1.442695
    %v655 = vpow.pop %v654
    %v656 = vadd.f32 %v655, 1.0
    %v657 = vrcp.pop %v656
    %v658 = vmul.f32 1.0, %v657
    %v659 = vtanh.pop %v652
    %v661 = vrot.slane %v561, 7
    %v663 = vmul.f32 %v658, %v661
    %665 = vrot.lane.b32.xlu0 %v659, 64
    %v666 = vpop.permute.xlu0 %665
    %v668 = vmul.f32 %v658, %v666
    %670 = vrot.lane.b32.xlu0 %v668, 32
    %v671 = vpop.permute.xlu0 %670
    %v673 = vadd.f32 %v663, %v671
    %v674 = vtanh.pop %v673
    %676 = vrot.lane.b32.xlu0 %v674, 64
    %v677 = vpop.permute.xlu0 %676
    %v679 = vmul.f32 %v658, %v677
    %v680 = vmul.f32 %v679, %v346
    %v682 = vrot.slane %v680, 3
    %v684 = vadd.f32 %v572, %v682
    %v686 = vrot.slane %v679, 3
    %687 = vrot.lane.b32.xlu0 %v686, 32
    %v688 = vpop.permute.xlu0 %687
    %v689 = vsel %vm245, %v688, 0
    %691 = vmatprep.subr.mxu0 0.0
    %692 = vmatpush1.msra.mxu0 %v240
    %693 = vmatprep.subr.mxu0 0.0
    %694 = vmatpush1.msra.mxu0 %v241
    %695 = vmatprep.subr.mxu0 0.0
    %696 = vmatpush1.msra.mxu0 %v242
    %697 = vmatprep.subr.mxu0 0.0
    %698 = vmatpush1.msra.mxu0 %v243
    %699 = vmatprep.subr.mxu0 0.0
    %700 = vmatpush1.msra.mxu0 0.0
    %701 = vmatprep.subr.mxu0 0.0
    %702 = vmatpush1.msra.mxu0 0.0
    %703 = vmatprep.subr.mxu0 0.0
    %704 = vmatpush1.msra.mxu0 0.0
    %705 = vmatprep.subr.mxu0 0.0
    %706 = vmatpush1.msra.mxu0 0.0
    %707 = vmatprep.subr.mxu0 0.0
    %708 = vmatpush1.msra.mxu0 0.0
    %709 = vmatprep.subr.mxu0 0.0
    %710 = vmatpush1.msra.mxu0 0.0
    %711 = vmatprep.subr.mxu0 0.0
    %712 = vmatpush1.msra.mxu0 0.0
    %713 = vmatprep.subr.mxu0 0.0
    %714 = vmatpush1.msra.mxu0 0.0
    %715 = vmatprep.subr.mxu0 0.0
    %716 = vmatpush1.msra.mxu0 0.0
    %717 = vmatprep.subr.mxu0 0.0
    %718 = vmatpush1.msra.mxu0 0.0
    %719 = vmatprep.subr.mxu0 0.0
    %720 = vmatpush1.msra.mxu0 0.0
    %721 = vmatprep.subr.mxu0 0.0
    %722 = vmatpush1.msra.mxu0 0.0
    %723 = vmatprep.subr.mxu0 0.0
    %724 = vmatpush1.msra.mxu0 0.0
    %725 = vmatprep.subr.mxu0 0.0
    %726 = vmatpush1.msra.mxu0 0.0
    %727 = vmatprep.subr.mxu0 0.0
    %728 = vmatpush1.msra.mxu0 0.0
    %729 = vmatprep.subr.mxu0 0.0
    %730 = vmatpush1.msra.mxu0 0.0
    %731 = vmatprep.subr.mxu0 0.0
    %732 = vmatpush1.msra.mxu0 0.0
    %733 = vmatprep.subr.mxu0 0.0
    %734 = vmatpush1.msra.mxu0 0.0
    %735 = vmatprep.subr.mxu0 0.0
    %736 = vmatpush1.msra.mxu0 0.0
    %737 = vmatprep.subr.mxu0 0.0
    %738 = vmatpush1.msra.mxu0 0.0
    %739 = vmatprep.subr.mxu0 0.0
    %740 = vmatpush1.msra.mxu0 0.0
    %741 = vmatprep.subr.mxu0 0.0
    %742 = vmatpush1.msra.mxu0 0.0
    %743 = vmatprep.subr.mxu0 0.0
    %744 = vmatpush1.msra.mxu0 0.0
    %745 = vmatprep.subr.mxu0 0.0
    %746 = vmatpush1.msra.mxu0 0.0
    %747 = vmatprep.subr.mxu0 0.0
    %748 = vmatpush1.msra.mxu0 0.0
    %749 = vmatprep.subr.mxu0 0.0
    %750 = vmatpush1.msra.mxu0 0.0
    %751 = vmatprep.subr.mxu0 0.0
    %752 = vmatpush1.msra.mxu0 0.0
    %753 = vmatprep.subr.mxu0 0.0
    %754 = vmatpush1.msra.mxu0 0.0
    %755 = vmatprep.mubr.f32.mxu0 0.0
    %756 = vmatmul.mubr.f32.gmra.mrb[0].mxu0 %v689
    %v757 = vpop.f32.mrb[0].mxu0
    %v758 = vadd.f32 0.0, %v757
    %v759 = vpop.f32.mrb[0].mxu0
    %760 = vdwg.mxu0
    %v762 = vrot.slane %v758, 4
    %v764 = vadd.f32 %v237, %v762
    %v765 = vxor.u32 %v764, 2147483648
    %v766 = vmul.f32 %v765, 1.442695
    %v767 = vpow.pop %v766
    %v768 = vadd.f32 %v767, 1.0
    %v769 = vrcp.pop %v768
    %v770 = vmul.f32 1.0, %v769
    %v771 = vtanh.pop %v764
    %v773 = vrot.slane %v673, 7
    %v775 = vmul.f32 %v770, %v773
    %777 = vrot.lane.b32.xlu0 %v771, 64
    %v778 = vpop.permute.xlu0 %777
    %v780 = vmul.f32 %v770, %v778
    %782 = vrot.lane.b32.xlu0 %v780, 32
    %v783 = vpop.permute.xlu0 %782
    %v785 = vadd.f32 %v775, %v783
    %v786 = vtanh.pop %v785
    %788 = vrot.lane.b32.xlu0 %v786, 64
    %v789 = vpop.permute.xlu0 %788
    %v791 = vmul.f32 %v770, %v789
    %v792 = vmul.f32 %v791, %v346
    %v794 = vrot.slane %v792, 4
    %v796 = vadd.f32 %v684, %v794
    %v798 = vrot.slane %v791, 4
    %799 = vrot.lane.b32.xlu0 %v798, 32
    %v800 = vpop.permute.xlu0 %799
    %v801 = vsel %vm245, %v800, 0
    %803 = vmatprep.subr.mxu0 0.0
    %804 = vmatpush1.msra.mxu0 %v240
    %805 = vmatprep.subr.mxu0 0.0
    %806 = vmatpush1.msra.mxu0 %v241
    %807 = vmatprep.subr.mxu0 0.0
    %808 = vmatpush1.msra.mxu0 %v242
    %809 = vmatprep.subr.mxu0 0.0
    %810 = vmatpush1.msra.mxu0 %v243
    %811 = vmatprep.subr.mxu0 0.0
    %812 = vmatpush1.msra.mxu0 0.0
    %813 = vmatprep.subr.mxu0 0.0
    %814 = vmatpush1.msra.mxu0 0.0
    %815 = vmatprep.subr.mxu0 0.0
    %816 = vmatpush1.msra.mxu0 0.0
    %817 = vmatprep.subr.mxu0 0.0
    %818 = vmatpush1.msra.mxu0 0.0
    %819 = vmatprep.subr.mxu0 0.0
    %820 = vmatpush1.msra.mxu0 0.0
    %821 = vmatprep.subr.mxu0 0.0
    %822 = vmatpush1.msra.mxu0 0.0
    %823 = vmatprep.subr.mxu0 0.0
    %824 = vmatpush1.msra.mxu0 0.0
    %825 = vmatprep.subr.mxu0 0.0
    %826 = vmatpush1.msra.mxu0 0.0
    %827 = vmatprep.subr.mxu0 0.0
    %828 = vmatpush1.msra.mxu0 0.0
    %829 = vmatprep.subr.mxu0 0.0
    %830 = vmatpush1.msra.mxu0 0.0
    %831 = vmatprep.subr.mxu0 0.0
    %832 = vmatpush1.msra.mxu0 0.0
    %833 = vmatprep.subr.mxu0 0.0
    %834 = vmatpush1.msra.mxu0 0.0
    %835 = vmatprep.subr.mxu0 0.0
    %836 = vmatpush1.msra.mxu0 0.0
    %837 = vmatprep.subr.mxu0 0.0
    %838 = vmatpush1.msra.mxu0 0.0
    %839 = vmatprep.subr.mxu0 0.0
    %840 = vmatpush1.msra.mxu0 0.0
    %841 = vmatprep.subr.mxu0 0.0
    %842 = vmatpush1.msra.mxu0 0.0
    %843 = vmatprep.subr.mxu0 0.0
    %844 = vmatpush1.msra.mxu0 0.0
    %845 = vmatprep.subr.mxu0 0.0
    %846 = vmatpush1.msra.mxu0 0.0
    %847 = vmatprep.subr.mxu0 0.0
    %848 = vmatpush1.msra.mxu0 0.0
    %849 = vmatprep.subr.mxu0 0.0
    %850 = vmatpush1.msra.mxu0 0.0
    %851 = vmatprep.subr.mxu0 0.0
    %852 = vmatpush1.msra.mxu0 0.0
    %853 = vmatprep.subr.mxu0 0.0
    %854 = vmatpush1.msra.mxu0 0.0
    %855 = vmatprep.subr.mxu0 0.0
    %856 = vmatpush1.msra.mxu0 0.0
    %857 = vmatprep.subr.mxu0 0.0
    %858 = vmatpush1.msra.mxu0 0.0
    %859 = vmatprep.subr.mxu0 0.0
    %860 = vmatpush1.msra.mxu0 0.0
    %861 = vmatprep.subr.mxu0 0.0
    %862 = vmatpush1.msra.mxu0 0.0
    %863 = vmatprep.subr.mxu0 0.0
    %864 = vmatpush1.msra.mxu0 0.0
    %865 = vmatprep.subr.mxu0 0.0
    %866 = vmatpush1.msra.mxu0 0.0
    %867 = vmatprep.mubr.f32.mxu0 0.0
    %868 = vmatmul.mubr.f32.gmra.mrb[0].mxu0 %v801
    %v869 = vpop.f32.mrb[0].mxu0
    %v870 = vadd.f32 0.0, %v869
    %v871 = vpop.f32.mrb[0].mxu0
    %872 = vdwg.mxu0
    %v874 = vrot.slane %v870, 3
    %v876 = vadd.f32 %v237, %v874
    %v877 = vxor.u32 %v876, 2147483648
    %v878 = vmul.f32 %v877, 1.442695
    %v879 = vpow.pop %v878
    %v880 = vadd.f32 %v879, 1.0
    %v881 = vrcp.pop %v880
    %v882 = vmul.f32 1.0, %v881
    %v883 = vtanh.pop %v876
    %v885 = vrot.slane %v785, 7
    %v887 = vmul.f32 %v882, %v885
    %889 = vrot.lane.b32.xlu0 %v883, 64
    %v890 = vpop.permute.xlu0 %889
    %v892 = vmul.f32 %v882, %v890
    %894 = vrot.lane.b32.xlu0 %v892, 32
    %v895 = vpop.permute.xlu0 %894
    %v897 = vadd.f32 %v887, %v895
    %v898 = vtanh.pop %v897
    %900 = vrot.lane.b32.xlu0 %v898, 64
    %v901 = vpop.permute.xlu0 %900
    %v903 = vmul.f32 %v882, %v901
    %v904 = vmul.f32 %v903, %v346
    %v906 = vrot.slane %v904, 5
    %v908 = vadd.f32 %v796, %v906
    %v910 = vrot.slane %v903, 5
    %911 = vrot.lane.b32.xlu0 %v910, 32
    %v912 = vpop.permute.xlu0 %911
    %v913 = vsel %vm245, %v912, 0
    %915 = vmatprep.subr.mxu0 0.0
    %916 = vmatpush1.msra.mxu0 %v240
    %917 = vmatprep.subr.mxu0 0.0
    %918 = vmatpush1.msra.mxu0 %v241
    %919 = vmatprep.subr.mxu0 0.0
    %920 = vmatpush1.msra.mxu0 %v242
    %921 = vmatprep.subr.mxu0 0.0
    %922 = vmatpush1.msra.mxu0 %v243
    %923 = vmatprep.subr.mxu0 0.0
    %924 = vmatpush1.msra.mxu0 0.0
    %925 = vmatprep.subr.mxu0 0.0
    %926 = vmatpush1.msra.mxu0 0.0
    %927 = vmatprep.subr.mxu0 0.0
    %928 = vmatpush1.msra.mxu0 0.0
    %929 = vmatprep.subr.mxu0 0.0
    %930 = vmatpush1.msra.mxu0 0.0
    %931 = vmatprep.subr.mxu0 0.0
    %932 = vmatpush1.msra.mxu0 0.0
    %933 = vmatprep.subr.mxu0 0.0
    %934 = vmatpush1.msra.mxu0 0.0
    %935 = vmatprep.subr.mxu0 0.0
    %936 = vmatpush1.msra.mxu0 0.0
    %937 = vmatprep.subr.mxu0 0.0
    %938 = vmatpush1.msra.mxu0 0.0
    %939 = vmatprep.subr.mxu0 0.0
    %940 = vmatpush1.msra.mxu0 0.0
    %941 = vmatprep.subr.mxu0 0.0
    %942 = vmatpush1.msra.mxu0 0.0
    %943 = vmatprep.subr.mxu0 0.0
    %944 = vmatpush1.msra.mxu0 0.0
    %945 = vmatprep.subr.mxu0 0.0
    %946 = vmatpush1.msra.mxu0 0.0
    %947 = vmatprep.subr.mxu0 0.0
    %948 = vmatpush1.msra.mxu0 0.0
    %949 = vmatprep.subr.mxu0 0.0
    %950 = vmatpush1.msra.mxu0 0.0
    %951 = vmatprep.subr.mxu0 0.0
    %952 = vmatpush1.msra.mxu0 0.0
    %953 = vmatprep.subr.mxu0 0.0
    %954 = vmatpush1.msra.mxu0 0.0
    %955 = vmatprep.subr.mxu0 0.0
    %956 = vmatpush1.msra.mxu0 0.0
    %957 = vmatprep.subr.mxu0 0.0
    %958 = vmatpush1.msra.mxu0 0.0
    %959 = vmatprep.subr.mxu0 0.0
    %960 = vmatpush1.msra.mxu0 0.0
    %961 = vmatprep.subr.mxu0 0.0
    %962 = vmatpush1.msra.mxu0 0.0
    %963 = vmatprep.subr.mxu0 0.0
    %964 = vmatpush1.msra.mxu0 0.0
    %965 = vmatprep.subr.mxu0 0.0
    %966 = vmatpush1.msra.mxu0 0.0
    %967 = vmatprep.subr.mxu0 0.0
    %968 = vmatpush1.msra.mxu0 0.0
    %969 = vmatprep.subr.mxu0 0.0
    %970 = vmatpush1.msra.mxu0 0.0
    %971 = vmatprep.subr.mxu0 0.0
    %972 = vmatpush1.msra.mxu0 0.0
    %973 = vmatprep.subr.mxu0 0.0
    %974 = vmatpush1.msra.mxu0 0.0
    %975 = vmatprep.subr.mxu0 0.0
    %976 = vmatpush1.msra.mxu0 0.0
    %977 = vmatprep.subr.mxu0 0.0
    %978 = vmatpush1.msra.mxu0 0.0
    %979 = vmatprep.mubr.f32.mxu0 0.0
    %980 = vmatmul.mubr.f32.gmra.mrb[0].mxu0 %v913
    %v981 = vpop.f32.mrb[0].mxu0
    %v982 = vadd.f32 0.0, %v981
    %v983 = vpop.f32.mrb[0].mxu0
    %984 = vdwg.mxu0
    %v986 = vrot.slane %v982, 2
    %v988 = vadd.f32 %v237, %v986
    %v989 = vxor.u32 %v988, 2147483648
    %v990 = vmul.f32 %v989, 1.442695
    %v991 = vpow.pop %v990
    %v992 = vadd.f32 %v991, 1.0
    %v993 = vrcp.pop %v992
    %v994 = vmul.f32 1.0, %v993
    %v995 = vtanh.pop %v988
    %v997 = vrot.slane %v897, 7
    %v999 = vmul.f32 %v994, %v997
    %1001 = vrot.lane.b32.xlu0 %v995, 64
    %v1002 = vpop.permute.xlu0 %1001
    %v1004 = vmul.f32 %v994, %v1002
    %1006 = vrot.lane.b32.xlu0 %v1004, 32
    %v1007 = vpop.permute.xlu0 %1006
    %v1009 = vadd.f32 %v999, %v1007
    %v1010 = vtanh.pop %v1009
    %1012 = vrot.lane.b32.xlu0 %v1010, 64
    %v1013 = vpop.permute.xlu0 %1012
    %v1015 = vmul.f32 %v994, %v1013
    %v1016 = vmul.f32 %v1015, %v346
    %v1018 = vrot.slane %v1016, 6
    %v1020 = vadd.f32 %v908, %v1018
    %v1022 = vrot.slane %v1015, 6
    %1023 = vrot.lane.b32.xlu0 %v1022, 32
    %v1024 = vpop.permute.xlu0 %1023
    %v1025 = vsel %vm245, %v1024, 0
    %1027 = vmatprep.subr.mxu0 0.0
    %1028 = vmatpush1.msra.mxu0 %v240
    %1029 = vmatprep.subr.mxu0 0.0
    %1030 = vmatpush1.msra.mxu0 %v241
    %1031 = vmatprep.subr.mxu0 0.0
    %1032 = vmatpush1.msra.mxu0 %v242
    %1033 = vmatprep.subr.mxu0 0.0
    %1034 = vmatpush1.msra.mxu0 %v243
    %1035 = vmatprep.subr.mxu0 0.0
    %1036 = vmatpush1.msra.mxu0 0.0
    %1037 = vmatprep.subr.mxu0 0.0
    %1038 = vmatpush1.msra.mxu0 0.0
    %1039 = vmatprep.subr.mxu0 0.0
    %1040 = vmatpush1.msra.mxu0 0.0
    %1041 = vmatprep.subr.mxu0 0.0
    %1042 = vmatpush1.msra.mxu0 0.0
    %1043 = vmatprep.subr.mxu0 0.0
    %1044 = vmatpush1.msra.mxu0 0.0
    %1045 = vmatprep.subr.mxu0 0.0
    %1046 = vmatpush1.msra.mxu0 0.0
    %1047 = vmatprep.subr.mxu0 0.0
    %1048 = vmatpush1.msra.mxu0 0.0
    %1049 = vmatprep.subr.mxu0 0.0
    %1050 = vmatpush1.msra.mxu0 0.0
    %1051 = vmatprep.subr.mxu0 0.0
    %1052 = vmatpush1.msra.mxu0 0.0
    %1053 = vmatprep.subr.mxu0 0.0
    %1054 = vmatpush1.msra.mxu0 0.0
    %1055 = vmatprep.subr.mxu0 0.0
    %1056 = vmatpush1.msra.mxu0 0.0
    %1057 = vmatprep.subr.mxu0 0.0
    %1058 = vmatpush1.msra.mxu0 0.0
    %1059 = vmatprep.subr.mxu0 0.0
    %1060 = vmatpush1.msra.mxu0 0.0
    %1061 = vmatprep.subr.mxu0 0.0
    %1062 = vmatpush1.msra.mxu0 0.0
    %1063 = vmatprep.subr.mxu0 0.0
    %1064 = vmatpush1.msra.mxu0 0.0
    %1065 = vmatprep.subr.mxu0 0.0
    %1066 = vmatpush1.msra.mxu0 0.0
    %1067 = vmatprep.subr.mxu0 0.0
    %1068 = vmatpush1.msra.mxu0 0.0
    %1069 = vmatprep.subr.mxu0 0.0
    %1070 = vmatpush1.msra.mxu0 0.0
    %1071 = vmatprep.subr.mxu0 0.0
    %1072 = vmatpush1.msra.mxu0 0.0
    %1073 = vmatprep.subr.mxu0 0.0
    %1074 = vmatpush1.msra.mxu0 0.0
    %1075 = vmatprep.subr.mxu0 0.0
    %1076 = vmatpush1.msra.mxu0 0.0
    %1077 = vmatprep.subr.mxu0 0.0
    %1078 = vmatpush1.msra.mxu0 0.0
    %1079 = vmatprep.subr.mxu0 0.0
    %1080 = vmatpush1.msra.mxu0 0.0
    %1081 = vmatprep.subr.mxu0 0.0
    %1082 = vmatpush1.msra.mxu0 0.0
    %1083 = vmatprep.subr.mxu0 0.0
    %1084 = vmatpush1.msra.mxu0 0.0
    %1085 = vmatprep.subr.mxu0 0.0
    %1086 = vmatpush1.msra.mxu0 0.0
    %1087 = vmatprep.subr.mxu0 0.0
    %1088 = vmatpush1.msra.mxu0 0.0
    %1089 = vmatprep.subr.mxu0 0.0
    %1090 = vmatpush1.msra.mxu0 0.0
    %1091 = vmatprep.mubr.f32.mxu0 0.0
    %1092 = vmatmul.mubr.f32.gmra.mrb[0].mxu0 %v1025
    %v1093 = vpop.f32.mrb[0].mxu0
    %v1094 = vadd.f32 0.0, %v1093
    %v1095 = vpop.f32.mrb[0].mxu0
    %1096 = vdwg.mxu0
    %v1098 = vrot.slane %v1094, 1
    %v1100 = vadd.f32 %v237, %v1098
    %v1101 = vxor.u32 %v1100, 2147483648
    %v1102 = vmul.f32 %v1101, 1.442695
    %v1103 = vpow.pop %v1102
    %v1104 = vadd.f32 %v1103, 1.0
    %v1105 = vrcp.pop %v1104
    %v1106 = vmul.f32 1.0, %v1105
    %v1107 = vtanh.pop %v1100
    %v1109 = vrot.slane %v1009, 7
    %v1111 = vmul.f32 %v1106, %v1109
    %1113 = vrot.lane.b32.xlu0 %v1107, 64
    %v1114 = vpop.permute.xlu0 %1113
    %v1116 = vmul.f32 %v1106, %v1114
    %1118 = vrot.lane.b32.xlu0 %v1116, 32
    %v1119 = vpop.permute.xlu0 %1118
    %v1121 = vadd.f32 %v1111, %v1119
    %v1122 = vtanh.pop %v1121
    %1124 = vrot.lane.b32.xlu0 %v1122, 64
    %v1125 = vpop.permute.xlu0 %1124
    %v1127 = vmul.f32 %v1106, %v1125
    %v1128 = vmul.f32 %v1127, %v346
    %v1130 = vrot.slane %v1128, 7
    %v1132 = vadd.f32 %v1020, %v1130
    %1134 = vrot.lane.b32.xlu0 %v1132, 32
    %v1135 = vpop.permute.xlu0 %1134
    %vm1137 = vcmask 253952
    %v1138 = vsel %vm1137, %v1135, 0.0
    %1139 = vadd.xlane.f32.xlu0 %v1138
    %v1140 = vpop.xlane.xlu0 %1139
    %v1141 = vld [vmem:[#allocation2 + $0x58] sm:$0x1]
    %v1142 = vadd.f32 %v1140, %v1141
    %v1143 = vxor.u32 %v1142, 2147483648
    %v1144 = vmul.f32 %v1143, 1.442695
    %v1145 = vpow.pop %v1144
    %v1146 = vadd.f32 %v1145, 1.0
    %v1147 = vrcp.pop %v1146
    %v1148 = vmul.f32 1.0, %v1147
    %1150 = vset.pattern.permute.xlu0 0
    %1151 = vperm.xlu0 %1150, %v1148
    %v1152 = vpop.permute.xlu0 %1151
    %1154 = vst [vmem:[#allocation5] sm:$0x1] %v1152
    // Predicated region
    $region18: #{forward_batched.1} parent=1 // pred_check
      _
    $region19: #{forward_batched.1} parent=1 // pred_check_branch
      %1156 = sbr.rel (0) target = $region21
    $region20: #{forward_batched.1} parent=1 // pred_region
      %s1158 = ssub.s32 16, 16
      %1159 = vsyncadd [#allocation4], %s1158
      %s1161 = sshll.u32 [#allocation5], 4
      %s1162 = int_to_ptr.vmem [resolvable:$true] %s1161
      %1164 = dma.vmem_to_hbm [thread:$0]  %s1162, 16, %s3, [#allocation4]
    $region21: #{forward_batched.1} parent=1 // pred_fallthru
      _
    // Predicated region
    $region22: #{forward_batched.1} parent=1 // pred_check
      _
    $region23: #{forward_batched.1} parent=1 // pred_check_branch
      %1166 = sbr.rel (0) target = $region25
    $region24: #{forward_batched.1} parent=1 // pred_region
      %1167 = dma.done [#allocation4], 16
    $region25: #{forward_batched.1} parent=1 // pred_fallthru
      _
    %1168 = vsyncpa [#allocation3], 1
    %1169 = vsyncpa [#allocation4], 1

</llo_original>
